<compile_context>
chip_gen: v7x
topology: tpu7x:2x2x1
jax: 0.10.0
libtpu: 0.0.40
codegen_flags: <defaults>
</compile_context>

<pallas_src>
import math
from functools import partial

import jax
import jax.numpy as jnp
import numpy as np
from jax import lax
from jax.experimental import pallas as pl
from jax.experimental.pallas import tpu as pltpu


_VMEM_LIMIT = 32 * 1024 * 1024  # explicit scoped-VMEM budget (safe on v5e/v6e/v7x)


def _rms(v, eps=1e-6):
    ms = jnp.mean(v * v, axis=-1, keepdims=True)
    return v * lax.rsqrt(ms + eps)


# ----------------------------------------------------------------------------
# Kernel A: rmsnorm -> QKV projection (bf16 MXU) -> RoPE (pure VPU math)
# ----------------------------------------------------------------------------
def qkv_rope_kernel(x_ref, w_ref, cos_ref, sin_ref, q_ref, k_ref, v_ref, *, C):
    x = x_ref[0]                                   # (Tt, C) f32
    h = _rms(x).astype(jnp.bfloat16)
    # w_ref columns: [ q | rotate_half(q) | k | rotate_half(k) | v ]
    # TODO(synk): for very large C (v7x, 64 MiB VMEM) tile this weight over
    # output columns with an extra grid axis instead of one full block.
    qkv = jnp.dot(h, w_ref[...], preferred_element_type=jnp.float32)  # (Tt, 5C)
    q = qkv[:, 0 * C:1 * C]
    qr = qkv[:, 1 * C:2 * C]
    k = qkv[:, 2 * C:3 * C]
    kr = qkv[:, 3 * C:4 * C]
    v = qkv[:, 4 * C:5 * C]
    cos = cos_ref[...]                             # (Tt, C) f32
    sin = sin_ref[...]                             # (Tt, C) f32, 2nd half sign-flipped
    q_ref[0] = (q * cos + qr * sin).astype(q_ref.dtype)
    k_ref[0] = (k * cos + kr * sin).astype(k_ref.dtype)
    v_ref[0] = v.astype(v_ref.dtype)


# ----------------------------------------------------------------------------
# Kernel B: flash attention — one (batch, head, q-tile) per output block,
#           online softmax over KV tiles on the innermost (arbitrary) axis.
# ----------------------------------------------------------------------------
def flash_attn_kernel(q_ref, k_ref, v_ref, y_ref, m_sc, l_sc, acc_sc,
                      *, tq, tk, scale):
    qi = pl.program_id(2)
    ki = pl.program_id(3)

    @pl.when(ki == 0)
    def _():
        m_sc[...] = jnp.full(m_sc.shape, -1e30, m_sc.dtype)
        l_sc[...] = jnp.zeros(l_sc.shape, l_sc.dtype)
        acc_sc[...] = jnp.zeros(acc_sc.shape, acc_sc.dtype)

    # Only KV tiles intersecting the causal triangle contribute.
    @pl.when(ki * tk < (qi + 1) * tq)
    def _():
        q = q_ref[0]                               # (tq, hd) bf16
        k = k_ref[0]                               # (tk, hd) bf16
        v = v_ref[0]                               # (tk, hd) bf16
        s = lax.dot_general(q, k, (((1,), (1,)), ((), ())),
                            preferred_element_type=jnp.float32) * scale
        row = qi * tq + lax.broadcasted_iota(jnp.int32, (tq, tk), 0)
        col = ki * tk + lax.broadcasted_iota(jnp.int32, (tq, tk), 1)
        s = jnp.where(row >= col, s, -1e30)
        m_prev = m_sc[...]
        m_new = jnp.maximum(m_prev, jnp.max(s, axis=-1, keepdims=True))
        alpha = jnp.exp(m_prev - m_new)
        p = jnp.exp(s - m_new)
        l_sc[...] = alpha * l_sc[...] + jnp.sum(p, axis=-1, keepdims=True)
        acc_sc[...] = alpha * acc_sc[...] + jnp.dot(
            p.astype(jnp.bfloat16), v, preferred_element_type=jnp.float32)
        m_sc[...] = m_new

    @pl.when(ki == pl.num_programs(3) - 1)
    def _():
        inv_l = pl.reciprocal(l_sc[...], approx=True)
        y_ref[0] = (acc_sc[...] * inv_l).astype(y_ref.dtype)


# ----------------------------------------------------------------------------
# Kernel C: attention out-proj + residual, rmsnorm, MLP tiled over 4C hidden
#           dim with a scratch accumulator, + residual.
# ----------------------------------------------------------------------------
def proj_mlp_kernel(x_ref, y_ref, wo_ref, wfc_ref, wp2_ref, o_ref,
                    xmid_sc, h2_sc, acc_sc, *, attn_scale):
    hh = pl.program_id(2)

    @pl.when(hh == 0)
    def _():
        attn = jnp.dot(y_ref[0], wo_ref[...], preferred_element_type=jnp.float32)
        xmid = x_ref[0] + attn_scale * attn
        xmid_sc[...] = xmid
        h2_sc[...] = _rms(xmid).astype(jnp.bfloat16)
        acc_sc[...] = jnp.zeros(acc_sc.shape, acc_sc.dtype)

    ff = jnp.dot(h2_sc[...], wfc_ref[...], preferred_element_type=jnp.float32)
    ff = 0.5 * ff * (1.0 + lax.erf(ff * (1.0 / math.sqrt(2.0))))   # exact GELU
    acc_sc[...] += jnp.dot(ff.astype(jnp.bfloat16), wp2_ref[...],
                           preferred_element_type=jnp.float32)

    @pl.when(hh == pl.num_programs(2) - 1)
    def _():
        o_ref[0] = xmid_sc[...] + acc_sc[...]


# ----------------------------------------------------------------------------
# Wrapper
# ----------------------------------------------------------------------------
def rotary_tables(T, head_dim, base=10000.0):
    inv_freq = 1.0 / (base ** (jnp.arange(0, head_dim, 2, dtype=jnp.float32)
                               / head_dim))
    t = jnp.arange(T, dtype=jnp.float32)
    freqs = jnp.outer(t, inv_freq)                 # (T, head_dim // 2)
    return jnp.cos(freqs), jnp.sin(freqs)


def block_forward(x, w_qkv, w_o, w_fc, w_p2, *, n_head, attn_scale,
                  t_tile=128, h_tile=512):
    B, T, C = x.shape
    hd = C // n_head
    d2 = hd // 2
    H4 = 4 * C

    tt = min(t_tile, T)
    hh_tile = min(h_tile, H4)
    assert C % n_head == 0 and hd % 2 == 0
    assert T % tt == 0 and H4 % hh_tile == 0
    nT, nH = T // tt, H4 // hh_tile

    # RoPE tables at full lane width (duplicated halves, sign baked into sin).
    cos, sin = rotary_tables(T, hd)                          # (T, d2)
    cos_full = jnp.concatenate([cos, cos], axis=-1)          # (T, hd)
    sin_full = jnp.concatenate([sin, -sin], axis=-1)         # (T, hd)
    cos_c = jnp.tile(cos_full, (1, n_head))                  # (T, C)
    sin_c = jnp.tile(sin_full, (1, n_head))                  # (T, C)

    # Bake the rotate-half permutation into extra weight columns (wrapper-side
    # layout plumbing): rot(q) = x @ w_q[:, perm].
    w_q, w_k, w_v = w_qkv[:, :C], w_qkv[:, C:2 * C], w_qkv[:, 2 * C:]
    base_idx = np.arange(hd)
    rot = np.concatenate([base_idx[d2:], base_idx[:d2]])
    perm = np.concatenate([rot + h * hd for h in range(n_head)])
    w_qkvx = jnp.concatenate(
        [w_q, w_q[:, perm], w_k, w_k[:, perm], w_v], axis=1).astype(jnp.bfloat16)
    w_o_b = w_o.astype(jnp.bfloat16)
    w_fc_b = w_fc.astype(jnp.bfloat16)
    w_p2_b = w_p2.astype(jnp.bfloat16)

    # ---- Kernel A: rmsnorm + QKV + RoPE ------------------------------------
    qkv_shape = jax.ShapeDtypeStruct((B, T, C), jnp.bfloat16)
    q_r, k_r, v_r = pl.pallas_call(
        partial(qkv_rope_kernel, C=C),
        out_shape=(qkv_shape, qkv_shape, qkv_shape),
        grid_spec=pltpu.PrefetchScalarGridSpec(
            num_scalar_prefetch=0,
            grid=(B, nT),
            in_specs=[
                pl.BlockSpec((1, tt, C), lambda b, t: (b, t, 0)),    # x
                pl.BlockSpec((C, 5 * C), lambda b, t: (0, 0)),       # W_qkv(+rot)
                pl.BlockSpec((tt, C), lambda b, t: (t, 0)),          # cos
                pl.BlockSpec((tt, C), lambda b, t: (t, 0)),          # sin
            ],
            out_specs=[
                pl.BlockSpec((1, tt, C), lambda b, t: (b, t, 0)),
                pl.BlockSpec((1, tt, C), lambda b, t: (b, t, 0)),
                pl.BlockSpec((1, tt, C), lambda b, t: (b, t, 0)),
            ],
        ),
        compiler_params=pltpu.CompilerParams(
            dimension_semantics=("parallel", "parallel"),
            vmem_limit_bytes=_VMEM_LIMIT),
    )(x, w_qkvx, cos_c, sin_c)

    # ---- Kernel B: flash attention -----------------------------------------
    y = pl.pallas_call(
        partial(flash_attn_kernel, tq=tt, tk=tt, scale=1.0 / math.sqrt(hd)),
        out_shape=jax.ShapeDtypeStruct((B, T, C), jnp.bfloat16),
        grid_spec=pltpu.PrefetchScalarGridSpec(
            num_scalar_prefetch=0,
            grid=(B, n_head, nT, nT),
            in_specs=[
                pl.BlockSpec((1, tt, hd), lambda b, h, qi, ki: (b, qi, h)),  # q
                pl.BlockSpec((1, tt, hd), lambda b, h, qi, ki: (b, ki, h)),  # k
                pl.BlockSpec((1, tt, hd), lambda b, h, qi, ki: (b, ki, h)),  # v
            ],
            out_specs=pl.BlockSpec((1, tt, hd), lambda b, h, qi, ki: (b, qi, h)),
            scratch_shapes=[
                pltpu.VMEM((tt, 1), jnp.float32),    # running max
                pltpu.VMEM((tt, 1), jnp.float32),    # running denom
                pltpu.VMEM((tt, hd), jnp.float32),   # output accumulator
            ],
        ),
        compiler_params=pltpu.CompilerParams(
            dimension_semantics=("parallel", "parallel", "parallel", "arbitrary"),
            vmem_limit_bytes=_VMEM_LIMIT),
    )(q_r, k_r, v_r)

    # ---- Kernel C: out-proj + residual + rmsnorm + MLP + residual ----------
    out = pl.pallas_call(
        partial(proj_mlp_kernel, attn_scale=attn_scale),
        out_shape=jax.ShapeDtypeStruct((B, T, C), jnp.float32),
        grid_spec=pltpu.PrefetchScalarGridSpec(
            num_scalar_prefetch=0,
            grid=(B, nT, nH),
            in_specs=[
                pl.BlockSpec((1, tt, C), lambda b, t, h: (b, t, 0)),   # x
                pl.BlockSpec((1, tt, C), lambda b, t, h: (b, t, 0)),   # attn y
                pl.BlockSpec((C, C), lambda b, t, h: (0, 0)),          # W_o
                pl.BlockSpec((C, hh_tile), lambda b, t, h: (0, h)),    # W_fc tile
                pl.BlockSpec((hh_tile, C), lambda b, t, h: (h, 0)),    # W_proj tile
            ],
            out_specs=pl.BlockSpec((1, tt, C), lambda b, t, h: (b, t, 0)),
            scratch_shapes=[
                pltpu.VMEM((tt, C), jnp.float32),    # x after attention residual
                pltpu.VMEM((tt, C), jnp.bfloat16),   # rmsnorm(xmid) in bf16
                pltpu.VMEM((tt, C), jnp.float32),    # MLP accumulator
            ],
        ),
        compiler_params=pltpu.CompilerParams(
            dimension_semantics=("parallel", "parallel", "arbitrary"),
            vmem_limit_bytes=_VMEM_LIMIT),
    )(x, y, w_o_b, w_fc_b, w_p2_b)
    return out


# ----------------------------------------------------------------------------
# Pure-JAX f32 reference (mirrors the PyTorch forward) for correctness check.
# ----------------------------------------------------------------------------
def block_reference(x, w_qkv, w_o, w_fc, w_p2, *, n_head, attn_scale):
    B, T, C = x.shape
    hd = C // n_head
    cos, sin = rotary_tables(T, hd)

    def rope(t):  # (B, T, H, hd)
        d = hd // 2
        t1, t2 = t[..., :d], t[..., d:]
        c = cos[None, :, None, :]
        s = sin[None, :, None, :]
        return jnp.concatenate([t1 * c + t2 * s, -t1 * s + t2 * c], axis=-1)

    h = _rms(x)
    qkv = h @ w_qkv
    q, k, v = jnp.split(qkv, 3, axis=-1)
    q = rope(q.reshape(B, T, n_head, hd))
    k = rope(k.reshape(B, T, n_head, hd))
    v = v.reshape(B, T, n_head, hd)
    s = jnp.einsum("bqhd,bkhd->bhqk", q, k) / math.sqrt(hd)
    mask = jnp.tril(jnp.ones((T, T), bool))
    s = jnp.where(mask[None, None], s, -jnp.inf)
    p = jax.nn.softmax(s, axis=-1)
    y = jnp.einsum("bhqk,bkhd->bqhd", p, v).reshape(B, T, C)
    x = x + attn_scale * (y @ w_o)

    h2 = _rms(x)
    ff = h2 @ w_fc
    ff = 0.5 * ff * (1.0 + lax.erf(ff / math.sqrt(2.0)))
    return x + ff @ w_p2


if __name__ == "__main__":
    # Small but MXU/lane-aligned config (per perf feedback: keep C, head_dim
    # and T multiples of 128): B=2, T=256, n_embd=256, n_head=2 (head_dim=128),
    # n_layer=2  ->  attn_scale = 1/sqrt(4) = 0.5
    B, T, C = 2, 256, 256
    n_head = 2
    n_layer = 2
    attn_scale = 1.0 / math.sqrt(2 * n_layer)

    key = jax.random.PRNGKey(0)
    kx, k1, k2, k3, k4 = jax.random.split(key, 5)
    x = jax.random.normal(kx, (B, T, C), jnp.float32)
    w_qkv = jax.random.normal(k1, (C, 3 * C), jnp.float32) * 0.02
    w_o = jax.random.normal(k2, (C, C), jnp.float32) * 0.02
    w_fc = jax.random.normal(k3, (C, 4 * C), jnp.float32) * 0.02
    w_p2 = jax.random.normal(k4, (4 * C, C), jnp.float32) * 0.02

    out = block_forward(x, w_qkv, w_o, w_fc, w_p2,
                        n_head=n_head, attn_scale=attn_scale)
    out = jax.block_until_ready(out)

    ref = block_reference(x, w_qkv, w_o, w_fc, w_p2,
                          n_head=n_head, attn_scale=attn_scale)
    # bf16 matmul operands -> compare against the f32 reference with a looser
    # tolerance, as recommended in the review.
    np.testing.assert_allclose(np.asarray(out), np.asarray(ref),
                               rtol=2e-2, atol=2e-2)
    print("KERNEL_OK")
</pallas_src>

<mosaic_0001>
module attributes {stable_mosaic.version = 11 : i64} {
  func.func @qkv_rope_kernel(%arg0: i32, %arg1: i32, %arg2: memref<1x128x256xf32, #tpu.memory_space<vmem>>, %arg3: memref<256x1280xbf16, #tpu.memory_space<vmem>>, %arg4: memref<128x256xf32, #tpu.memory_space<vmem>>, %arg5: memref<128x256xf32, #tpu.memory_space<vmem>>, %arg6: memref<1x128x256xbf16, #tpu.memory_space<vmem>>, %arg7: memref<1x128x256xbf16, #tpu.memory_space<vmem>>, %arg8: memref<1x128x256xbf16, #tpu.memory_space<vmem>>) attributes {dimension_semantics = [#tpu.dimension_semantics<parallel>, #tpu.dimension_semantics<parallel>], iteration_bounds = array<i64: 2, 2>, scalar_prefetch = 0 : i64, scratch_operands = 0 : i64, tpu.core_type = #tpu.core_type<tc>, window_params = [{transform_indices = @transform_0, window_bounds = array<i64: 1, 128, 256>}, {pipeline_mode = #tpu.pipeline_mode<synchronous>, transform_indices = @transform_1, window_bounds = array<i64: 256, 1280>}, {transform_indices = @transform_2, window_bounds = array<i64: 128, 256>}, {transform_indices = @transform_3, window_bounds = array<i64: 128, 256>}, {transform_indices = @transform_4, window_bounds = array<i64: 1, 128, 256>}, {transform_indices = @transform_5, window_bounds = array<i64: 1, 128, 256>}, {transform_indices = @transform_6, window_bounds = array<i64: 1, 128, 256>}]} {
    %c0 = arith.constant 0 : index
    %c0_0 = arith.constant 0 : index
    %c0_1 = arith.constant 0 : index
    %0 = vector.load %arg2[%c0, %c0_0, %c0_1] : memref<1x128x256xf32, #tpu.memory_space<vmem>>, vector<1x128x256xf32>
    %1 = vector.shape_cast %0 : vector<1x128x256xf32> to vector<128x256xf32>
    %2 = arith.mulf %1, %1 : vector<128x256xf32>
    %cst = arith.constant dense<0.000000e+00> : vector<128xf32>
    %3 = vector.multi_reduction <add>, %2, %cst [1] : vector<128x256xf32> to vector<128xf32>
    %4 = vector.shape_cast %3 : vector<128xf32> to vector<128x1xf32>
    %cst_2 = arith.constant 2.560000e+02 : f32
    %5 = vector.broadcast %cst_2 : f32 to vector<128x1xf32>
    %6 = arith.divf %4, %5 : vector<128x1xf32>
    %cst_3 = arith.constant 9.99999997E-7 : f32
    %7 = vector.broadcast %cst_3 : f32 to vector<128x1xf32>
    %8 = arith.addf %6, %7 : vector<128x1xf32>
    %9 = math.rsqrt %8 : vector<128x1xf32>
    %10 = vector.broadcast %9 : vector<128x1xf32> to vector<128x256xf32>
    %11 = arith.mulf %1, %10 : vector<128x256xf32>
    %12 = arith.truncf %11 : vector<128x256xf32> to vector<128x256xbf16>
    %c0_4 = arith.constant 0 : index
    %c0_5 = arith.constant 0 : index
    %13 = vector.load %arg3[%c0_4, %c0_5] : memref<256x1280xbf16, #tpu.memory_space<vmem>>, vector<256x1280xbf16>
    %cst_6 = arith.constant dense<0.000000e+00> : vector<128x1280xf32>
    %14 = tpu.matmul %12, %13, %cst_6 {dimension_numbers = #tpu.dot_dimension_numbers<[1], [0], [0], [1], [0, 0, 1, 1], [], []>} : vector<128x256xbf16>, vector<256x1280xbf16>, vector<128x1280xf32> -> vector<128x1280xf32>
    %15 = vector.extract_strided_slice %14 {offsets = [0, 0], sizes = [128, 256], strides = [1, 1]} : vector<128x1280xf32> to vector<128x256xf32>
    %16 = vector.extract_strided_slice %14 {offsets = [0, 256], sizes = [128, 256], strides = [1, 1]} : vector<128x1280xf32> to vector<128x256xf32>
    %17 = vector.extract_strided_slice %14 {offsets = [0, 512], sizes = [128, 256], strides = [1, 1]} : vector<128x1280xf32> to vector<128x256xf32>
    %18 = vector.extract_strided_slice %14 {offsets = [0, 768], sizes = [128, 256], strides = [1, 1]} : vector<128x1280xf32> to vector<128x256xf32>
    %19 = vector.extract_strided_slice %14 {offsets = [0, 1024], sizes = [128, 256], strides = [1, 1]} : vector<128x1280xf32> to vector<128x256xf32>
    %c0_7 = arith.constant 0 : index
    %c0_8 = arith.constant 0 : index
    %20 = vector.load %arg4[%c0_7, %c0_8] : memref<128x256xf32, #tpu.memory_space<vmem>>, vector<128x256xf32>
    %c0_9 = arith.constant 0 : index
    %c0_10 = arith.constant 0 : index
    %21 = vector.load %arg5[%c0_9, %c0_10] : memref<128x256xf32, #tpu.memory_space<vmem>>, vector<128x256xf32>
    %22 = arith.mulf %15, %20 : vector<128x256xf32>
    %23 = arith.mulf %16, %21 : vector<128x256xf32>
    %24 = arith.addf %22, %23 : vector<128x256xf32>
    %25 = arith.truncf %24 : vector<128x256xf32> to vector<128x256xbf16>
    %c0_11 = arith.constant 0 : index
    %c0_12 = arith.constant 0 : index
    %c0_13 = arith.constant 0 : index
    %26 = vector.load %arg6[%c0_11, %c0_12, %c0_13] : memref<1x128x256xbf16, #tpu.memory_space<vmem>>, vector<1x128x256xbf16>
    %27 = vector.shape_cast %26 : vector<1x128x256xbf16> to vector<128x256xbf16>
    %28 = vector.shape_cast %25 : vector<128x256xbf16> to vector<1x128x256xbf16>
    tpu.vector_store %arg6[%c0_11, %c0_12, %c0_13], %28 {strides = array<i32>} : memref<1x128x256xbf16, #tpu.memory_space<vmem>>, vector<1x128x256xbf16>,
    %29 = arith.mulf %17, %20 : vector<128x256xf32>
    %30 = arith.mulf %18, %21 : vector<128x256xf32>
    %31 = arith.addf %29, %30 : vector<128x256xf32>
    %32 = arith.truncf %31 : vector<128x256xf32> to vector<128x256xbf16>
    %c0_14 = arith.constant 0 : index
    %c0_15 = arith.constant 0 : index
    %c0_16 = arith.constant 0 : index
    %33 = vector.load %arg7[%c0_14, %c0_15, %c0_16] : memref<1x128x256xbf16, #tpu.memory_space<vmem>>, vector<1x128x256xbf16>
    %34 = vector.shape_cast %33 : vector<1x128x256xbf16> to vector<128x256xbf16>
    %35 = vector.shape_cast %32 : vector<128x256xbf16> to vector<1x128x256xbf16>
    tpu.vector_store %arg7[%c0_14, %c0_15, %c0_16], %35 {strides = array<i32>} : memref<1x128x256xbf16, #tpu.memory_space<vmem>>, vector<1x128x256xbf16>,
    %36 = arith.truncf %19 : vector<128x256xf32> to vector<128x256xbf16>
    %c0_17 = arith.constant 0 : index
    %c0_18 = arith.constant 0 : index
    %c0_19 = arith.constant 0 : index
    %37 = vector.load %arg8[%c0_17, %c0_18, %c0_19] : memref<1x128x256xbf16, #tpu.memory_space<vmem>>, vector<1x128x256xbf16>
    %38 = vector.shape_cast %37 : vector<1x128x256xbf16> to vector<128x256xbf16>
    %39 = vector.shape_cast %36 : vector<128x256xbf16> to vector<1x128x256xbf16>
    tpu.vector_store %arg8[%c0_17, %c0_18, %c0_19], %39 {strides = array<i32>} : memref<1x128x256xbf16, #tpu.memory_space<vmem>>, vector<1x128x256xbf16>,
    return
  }
  func.func @transform_0(%arg0: i32, %arg1: i32) -> (i32, i32, i32) {
    %c0_i32 = arith.constant 0 : i32
    %c0_i32_0 = arith.constant 0 : i32
    return %arg0, %arg1, %c0_i32 : i32, i32, i32
  }
  func.func @transform_1(%arg0: i32, %arg1: i32) -> (i32, i32) {
    %c0_i32 = arith.constant 0 : i32
    %c0_i32_0 = arith.constant 0 : i32
    %c0_i32_1 = arith.constant 0 : i32
    return %c0_i32, %c0_i32_0 : i32, i32
  }
  func.func @transform_2(%arg0: i32, %arg1: i32) -> (i32, i32) {
    %c0_i32 = arith.constant 0 : i32
    %c0_i32_0 = arith.constant 0 : i32
    return %arg1, %c0_i32 : i32, i32
  }
  func.func @transform_3(%arg0: i32, %arg1: i32) -> (i32, i32) {
    %c0_i32 = arith.constant 0 : i32
    %c0_i32_0 = arith.constant 0 : i32
    return %arg1, %c0_i32 : i32, i32
  }
  func.func @transform_4(%arg0: i32, %arg1: i32) -> (i32, i32, i32) {
    %c0_i32 = arith.constant 0 : i32
    %c0_i32_0 = arith.constant 0 : i32
    return %arg0, %arg1, %c0_i32 : i32, i32, i32
  }
  func.func @transform_5(%arg0: i32, %arg1: i32) -> (i32, i32, i32) {
    %c0_i32 = arith.constant 0 : i32
    %c0_i32_0 = arith.constant 0 : i32
    return %arg0, %arg1, %c0_i32 : i32, i32, i32
  }
  func.func @transform_6(%arg0: i32, %arg1: i32) -> (i32, i32, i32) {
    %c0_i32 = arith.constant 0 : i32
    %c0_i32_0 = arith.constant 0 : i32
    return %arg0, %arg1, %c0_i32 : i32, i32, i32
  }
}

</mosaic_0001>

<llo_original>
// kernel: tpu_custom_call.1
$region0: #{tpu_custom_call.1}
  #allocation0 [shape = 'u32[]', space=smem, size = 0x4, offset = 0x4, fixed_abs, tag = 'smem constant byte address 0x4 - core index']
  #allocation1 [shape = 'u32[144,128]{1,0:T(1,128)}', space=vmem, size = 0x12000, scoped, tag = 'internal scratch']
  %s0 = inlined_call_operand.hbm [shape: f32[2,256,256], index: 0, kind: input, shape index: {}]
  %s1 = inlined_call_operand.hbm [shape: bf16[256,1280], index: 1, kind: input, shape index: {}]
  %s2 = inlined_call_operand.hbm [shape: f32[256,256], index: 2, kind: input, shape index: {}]
  %s3 = inlined_call_operand.hbm [shape: f32[256,256], index: 3, kind: input, shape index: {}]
  %s4 = inlined_call_operand.hbm [shape: bf16[2,256,256], index: 4, kind: output, shape index: {0}]
  %s5 = inlined_call_operand.hbm [shape: bf16[2,256,256], index: 5, kind: output, shape index: {1}]
  %s6 = inlined_call_operand.hbm [shape: bf16[2,256,256], index: 6, kind: output, shape index: {2}]
  %7 = xla_tuple %s4, %s5, %s6
  %s8 = sld [smem:[#allocation0]]
  $region81: #{tpu_custom_call.1} parent=0
    _
  %s10 = ssub.s32 1, %s8
  %s11 = scalar_select 0, %s10, %s8
  $region1: #{tpu_custom_call.1} parent=0
    #allocation2 [shape = 'u8[262144]{0}', space=vmem, size = 0x40000, scoped, tag = 'input window, operand 0']
    #allocation3 [shape = 's32[2]{0}', space=sflag, size = 0x8, scoped, tag = 'scoped memory for tpu_custom_call.1']
    #allocation4 [shape = 's32[2]{0}', space=sflag, size = 0x8, scoped, tag = 'scoped memory for tpu_custom_call.1']
    #allocation5 [shape = 'u8[655360]{0}', space=vmem, size = 0xa0000, scoped, tag = 'input window, operand 1, single buffered']
    #allocation6 [shape = 's32[1]{0}', space=sflag, size = 0x4, scoped, tag = 'scoped memory for tpu_custom_call.1']
    #allocation7 [shape = 'u8[262144]{0}', space=vmem, size = 0x40000, scoped, tag = 'input window, operand 2']
    #allocation8 [shape = 'u8[262144]{0}', space=vmem, size = 0x40000, scoped, tag = 'input window, operand 3']
    #allocation9 [shape = 'u8[131072]{0}', space=vmem, size = 0x20000, scoped, tag = 'output window, operand 0']
    #allocation10 [shape = 'u8[131072]{0}', space=vmem, size = 0x20000, scoped, tag = 'output window, operand 1']
    #allocation11 [shape = 's32[2]{0}', space=sflag, size = 0x8, scoped, tag = 'scoped memory for tpu_custom_call.1']
    #allocation12 [shape = 'u8[131072]{0}', space=vmem, size = 0x20000, scoped, tag = 'output window, operand 2']
    %12 = vsyncpa [#allocation3], 0
    %s13 = scalar_lea.sflag [#allocation3], 1
    %14 = vsyncpa %s13, 0
    %15 = vsyncpa [#allocation6], 0
    %16 = vsyncpa [#allocation4], 0
    %s17 = scalar_lea.sflag [#allocation4], 1
    %18 = vsyncpa %s17, 0
    %19 = vsyncpa [#allocation11], 0
    %s20 = scalar_lea.sflag [#allocation11], 1
    %21 = vsyncpa %s20, 0
    loop: start=0, step=1, limit=6
    $region2: #{tpu_custom_call.1} parent=1 // loop_pre_header
      _
    $region3: #{tpu_custom_call.1} parent=1 // loop_header
      %s23 = sphi 0, %s27
      %p24 = scmp.ge.s32.totalorder %s23, 6
      %s30 = sphi 0, %s42
      %s31 = sphi 0, %s38
      %s32 = sphi 0, %s30
      %s33 = sphi 0, %s31
      %s34 = sphi 0, %s32
      %s35 = sphi 0, %s33
      %s47 = sphi 0, %s49
      %s50 = sphi 0, %s47
      %s51 = sphi 0, %s50
      %s67 = sphi 0, %s51
      %s71 = sphi 0, %s71
      %s73 = sphi 0, %s71
      %s74 = sphi 0, %s73
      %s88 = sphi 0, %s74
      %s94 = sphi 0, %s96
      %s97 = sphi 0, %s94
      %s98 = sphi 0, %s97
      %s114 = sphi 0, %s98
      %s120 = sphi 0, %s122
      %s123 = sphi 0, %s120
      %s124 = sphi 0, %s123
      %s140 = sphi 0, %s124
      %s148 = sphi 0, %s150
      %s151 = sphi 0, %s148
      %s152 = sphi 0, %s151
      %s168 = sphi 0, %s152
      %s176 = sphi 0, %s178
      %s179 = sphi 0, %s176
      %s180 = sphi 0, %s179
      %s196 = sphi 0, %s180
      %s204 = sphi 0, %s206
      %s207 = sphi 0, %s204
      %s208 = sphi 0, %s207
      %s224 = sphi 0, %s208
    $region4: #{tpu_custom_call.1} parent=1 // loop_header_branch
      %26 = sbr.rel (%p24) target = $region8
    $region5: #{tpu_custom_call.1} parent=1 // loop_body
      %s28 = ssub.s32 %s23, 1
      %s29 = ssub.s32 %s23, 2
      %s36 = sadd.s32 1, %s31
      %p37 = scmp.ge.s32.totalorder %s36, 2
      %s38 = scalar_select %p37, 0, %s36
      %s39 = sadd.s32 1, %s30
      %s40 = scalar_select %p37, %s39, %s30
      %p41 = scmp.ge.s32.totalorder %s40, 2
      %s42 = scalar_select %p41, 0, %s40
      %s43 = ssub.s32 %s30, %s42
      %s44 = ssub.s32 %s31, %s38
      %s45 = sor.u32 %s43, %s44
      %p46 = scmp.eq.s32.totalorder %s45, 0
      %s48 = sadd.s32 %s47, 1
      %s49 = scalar_select %p46, %s47, %s48
      %p52 = pneg %p46
      %p53 = scmp.eq.s32.totalorder %s23, 3
      %p54 = por %p52, %p53
      %p55 = scmp.ne.s32.totalorder %s47, %s50
      %p56 = scmp.eq.s32.totalorder %s23, 0
      %p57 = por %p55, %p56
      %p58 = scmp.ne.s32.totalorder %s47, %s50
      %p59 = scmp.eq.s32.totalorder %s28, 3
      %p60 = por %p58, %p59
      %p61 = scmp.ne.s32.totalorder %s50, %s51
      %p62 = scmp.eq.s32.totalorder %s28, 0
      %p63 = por %p61, %p62
      %p64 = scmp.ne.s32.totalorder %s50, %s51
      %p65 = scmp.eq.s32.totalorder %s29, 3
      %p66 = por %p64, %p65
      %p68 = scmp.ne.s32.totalorder %s51, %s67
      %p69 = scmp.eq.s32.totalorder %s29, 0
      %p70 = por %p68, %p69
      %s72 = sadd.s32 %s71, 1
      %p75 = scmp.eq.s32.totalorder %s23, 3
      %p76 = scmp.ne.s32.totalorder %s71, %s73
      %p77 = scmp.eq.s32.totalorder %s23, 0
      %p78 = por %p76, %p77
      %p79 = scmp.ne.s32.totalorder %s71, %s73
      %p80 = scmp.eq.s32.totalorder %s28, 3
      %p81 = por %p79, %p80
      %p82 = scmp.ne.s32.totalorder %s73, %s74
      %p83 = scmp.eq.s32.totalorder %s28, 0
      %p84 = por %p82, %p83
      %p85 = scmp.ne.s32.totalorder %s73, %s74
      %p86 = scmp.eq.s32.totalorder %s29, 3
      %p87 = por %p85, %p86
      %p89 = scmp.ne.s32.totalorder %s74, %s88
      %p90 = scmp.eq.s32.totalorder %s29, 0
      %p91 = por %p89, %p90
      %s92 = ssub.s32 %s31, %s38
      %p93 = scmp.eq.s32.totalorder %s92, 0
      %s95 = sadd.s32 %s94, 1
      %s96 = scalar_select %p93, %s94, %s95
      %p99 = pneg %p93
      %p100 = scmp.eq.s32.totalorder %s23, 3
      %p101 = por %p99, %p100
      %p102 = scmp.ne.s32.totalorder %s94, %s97
      %p103 = scmp.eq.s32.totalorder %s23, 0
      %p104 = por %p102, %p103
      %p105 = scmp.ne.s32.totalorder %s94, %s97
      %p106 = scmp.eq.s32.totalorder %s28, 3
      %p107 = por %p105, %p106
      %p108 = scmp.ne.s32.totalorder %s97, %s98
      %p109 = scmp.eq.s32.totalorder %s28, 0
      %p110 = por %p108, %p109
      %p111 = scmp.ne.s32.totalorder %s97, %s98
      %p112 = scmp.eq.s32.totalorder %s29, 3
      %p113 = por %p111, %p112
      %p115 = scmp.ne.s32.totalorder %s98, %s114
      %p116 = scmp.eq.s32.totalorder %s29, 0
      %p117 = por %p115, %p116
      %s118 = ssub.s32 %s31, %s38
      %p119 = scmp.eq.s32.totalorder %s118, 0
      %s121 = sadd.s32 %s120, 1
      %s122 = scalar_select %p119, %s120, %s121
      %p125 = pneg %p119
      %p126 = scmp.eq.s32.totalorder %s23, 3
      %p127 = por %p125, %p126
      %p128 = scmp.ne.s32.totalorder %s120, %s123
      %p129 = scmp.eq.s32.totalorder %s23, 0
      %p130 = por %p128, %p129
      %p131 = scmp.ne.s32.totalorder %s120, %s123
      %p132 = scmp.eq.s32.totalorder %s28, 3
      %p133 = por %p131, %p132
      %p134 = scmp.ne.s32.totalorder %s123, %s124
      %p135 = scmp.eq.s32.totalorder %s28, 0
      %p136 = por %p134, %p135
      %p137 = scmp.ne.s32.totalorder %s123, %s124
      %p138 = scmp.eq.s32.totalorder %s29, 3
      %p139 = por %p137, %p138
      %p141 = scmp.ne.s32.totalorder %s124, %s140
      %p142 = scmp.eq.s32.totalorder %s29, 0
      %p143 = por %p141, %p142
      %s144 = ssub.s32 %s30, %s42
      %s145 = ssub.s32 %s31, %s38
      %s146 = sor.u32 %s144, %s145
      %p147 = scmp.eq.s32.totalorder %s146, 0
      %s149 = sadd.s32 %s148, 1
      %s150 = scalar_select %p147, %s148, %s149
      %p153 = pneg %p147
      %p154 = scmp.eq.s32.totalorder %s23, 3
      %p155 = por %p153, %p154
      %p156 = scmp.ne.s32.totalorder %s148, %s151
      %p157 = scmp.eq.s32.totalorder %s23, 0
      %p158 = por %p156, %p157
      %p159 = scmp.ne.s32.totalorder %s148, %s151
      %p160 = scmp.eq.s32.totalorder %s28, 3
      %p161 = por %p159, %p160
      %p162 = scmp.ne.s32.totalorder %s151, %s152
      %p163 = scmp.eq.s32.totalorder %s28, 0
      %p164 = por %p162, %p163
      %p165 = scmp.ne.s32.totalorder %s151, %s152
      %p166 = scmp.eq.s32.totalorder %s29, 3
      %p167 = por %p165, %p166
      %p169 = scmp.ne.s32.totalorder %s152, %s168
      %p170 = scmp.eq.s32.totalorder %s29, 0
      %p171 = por %p169, %p170
      %s172 = ssub.s32 %s30, %s42
      %s173 = ssub.s32 %s31, %s38
      %s174 = sor.u32 %s172, %s173
      %p175 = scmp.eq.s32.totalorder %s174, 0
      %s177 = sadd.s32 %s176, 1
      %s178 = scalar_select %p175, %s176, %s177
      %p181 = pneg %p175
      %p182 = scmp.eq.s32.totalorder %s23, 3
      %p183 = por %p181, %p182
      %p184 = scmp.ne.s32.totalorder %s176, %s179
      %p185 = scmp.eq.s32.totalorder %s23, 0
      %p186 = por %p184, %p185
      %p187 = scmp.ne.s32.totalorder %s176, %s179
      %p188 = scmp.eq.s32.totalorder %s28, 3
      %p189 = por %p187, %p188
      %p190 = scmp.ne.s32.totalorder %s179, %s180
      %p191 = scmp.eq.s32.totalorder %s28, 0
      %p192 = por %p190, %p191
      %p193 = scmp.ne.s32.totalorder %s179, %s180
      %p194 = scmp.eq.s32.totalorder %s29, 3
      %p195 = por %p193, %p194
      %p197 = scmp.ne.s32.totalorder %s180, %s196
      %p198 = scmp.eq.s32.totalorder %s29, 0
      %p199 = por %p197, %p198
      %s200 = ssub.s32 %s30, %s42
      %s201 = ssub.s32 %s31, %s38
      %s202 = sor.u32 %s200, %s201
      %p203 = scmp.eq.s32.totalorder %s202, 0
      %s205 = sadd.s32 %s204, 1
      %s206 = scalar_select %p203, %s204, %s205
      %p209 = pneg %p203
      %p210 = scmp.eq.s32.totalorder %s23, 3
      %p211 = por %p209, %p210
      %p212 = scmp.ne.s32.totalorder %s204, %s207
      %p213 = scmp.eq.s32.totalorder %s23, 0
      %p214 = por %p212, %p213
      %p215 = scmp.ne.s32.totalorder %s204, %s207
      %p216 = scmp.eq.s32.totalorder %s28, 3
      %p217 = por %p215, %p216
      %p218 = scmp.ne.s32.totalorder %s207, %s208
      %p219 = scmp.eq.s32.totalorder %s28, 0
      %p220 = por %p218, %p219
      %p221 = scmp.ne.s32.totalorder %s207, %s208
      %p222 = scmp.eq.s32.totalorder %s29, 3
      %p223 = por %p221, %p222
      %p225 = scmp.ne.s32.totalorder %s208, %s224
      %p226 = scmp.eq.s32.totalorder %s29, 0
      %p227 = por %p225, %p226
      %p228 = scmp.le.s32.totalorder 1, %s23
      %p229 = scmp.lt.s32.totalorder %s23, 5
      %p230 = pnand %p228, %p229
      %p231 = pneg %p230
      // Predicated region
      $region9: #{tpu_custom_call.1} parent=5 // pred_check
        _
      $region10: #{tpu_custom_call.1} parent=5 // pred_check_branch
        %233 = sbr.rel (%p230) target = $region12
      $region11: #{tpu_custom_call.1} parent=5 // pred_region
        %s234 = ssub.s32 %s23, 1
        // Predicated region
        $region13: #{tpu_custom_call.1} parent=11 // pred_check
          %p235 = pneg %p84
        $region14: #{tpu_custom_call.1} parent=11 // pred_check_branch
          %237 = sbr.rel (%p235) target = $region16
        $region15: #{tpu_custom_call.1} parent=11 // pred_region
          %s239 = ssub.s32 20480, 20480
          %240 = vsyncadd [#allocation6], %s239
          %s241 = sshll.u32 [#allocation5], 4
          %s242 = int_to_ptr.vmem [resolvable:$true] %s241
          %247 = dma.hbm_to_vmem [thread:$0]  %s1, 20480, %s242, [#allocation6], 640, 640, 40
        $region16: #{tpu_custom_call.1} parent=11 // pred_fallthru
          _
      $region12: #{tpu_custom_call.1} parent=5 // pred_fallthru
        _
      %p248 = scmp.lt.s32.totalorder %s23, 4
      // Predicated region
      $region17: #{tpu_custom_call.1} parent=5 // pred_check
        %p249 = pneg %p248
      $region18: #{tpu_custom_call.1} parent=5 // pred_check_branch
        %251 = sbr.rel (%p249) target = $region20
      $region19: #{tpu_custom_call.1} parent=5 // pred_region
        // Predicated region
        $region21: #{tpu_custom_call.1} parent=19 // pred_check
          %p252 = pneg %p57
        $region22: #{tpu_custom_call.1} parent=19 // pred_check_branch
          %254 = sbr.rel (%p252) target = $region24
        $region23: #{tpu_custom_call.1} parent=19 // pred_region
          %s255 = sand.u32 %s23, 1
          %s256 = scalar_lea.sflag [#allocation3], %s255
          %s257 = sand.u32 %s47, 1
          %s258 = smul.addr %s257, 256
          %s259 = scalar_lea.vmem [#allocation2], %s258
          %s260 = smul.u32 16, %s31
          %s262 = ssub.s32 4096, 4096
          %263 = vsyncadd %s256, %s262
          %s264 = smul.addr %s260, 2
          %s265 = smul.addr %s30, 64
          %s266 = sadd.s32 %s264, %s265
          %s267 = smul.addr %s266, 128
          %s268 = scalar_lea.hbm %s0, %s267
          %s269 = sshll.u32 %s259, 4
          %s270 = int_to_ptr.vmem [resolvable:$true] %s269
          %275 = dma.hbm_to_vmem [thread:$0]  %s268, 4096, %s270, %s256, 256, 256, 16
        $region24: #{tpu_custom_call.1} parent=19 // pred_fallthru
          _
        // Predicated region
        $region25: #{tpu_custom_call.1} parent=19 // pred_check
          %p276 = pneg %p104
        $region26: #{tpu_custom_call.1} parent=19 // pred_check_branch
          %278 = sbr.rel (%p276) target = $region28
        $region27: #{tpu_custom_call.1} parent=19 // pred_region
          %s279 = sand.u32 %s23, 1
          %s280 = scalar_lea.sflag [#allocation3], %s279
          %s281 = sand.u32 %s94, 1
          %s282 = smul.addr %s281, 256
          %s283 = scalar_lea.vmem [#allocation7], %s282
          %s284 = smul.u32 16, %s31
          %s286 = ssub.s32 4096, 4096
          %287 = vsyncadd %s280, %s286
          %s288 = smul.addr %s284, 2
          %s289 = smul.addr %s288, 128
          %s290 = scalar_lea.hbm %s2, %s289
          %s291 = sshll.u32 %s283, 4
          %s292 = int_to_ptr.vmem [resolvable:$true] %s291
          %297 = dma.hbm_to_vmem [thread:$0]  %s290, 4096, %s292, %s280, 256, 256, 16
        $region28: #{tpu_custom_call.1} parent=19 // pred_fallthru
          _
        // Predicated region
        $region29: #{tpu_custom_call.1} parent=19 // pred_check
          %p298 = pneg %p130
        $region30: #{tpu_custom_call.1} parent=19 // pred_check_branch
          %300 = sbr.rel (%p298) target = $region32
        $region31: #{tpu_custom_call.1} parent=19 // pred_region
          %s301 = sand.u32 %s23, 1
          %s302 = scalar_lea.sflag [#allocation3], %s301
          %s303 = sand.u32 %s120, 1
          %s304 = smul.addr %s303, 256
          %s305 = scalar_lea.vmem [#allocation8], %s304
          %s306 = smul.u32 16, %s31
          %s308 = ssub.s32 4096, 4096
          %309 = vsyncadd %s302, %s308
          %s310 = smul.addr %s306, 2
          %s311 = smul.addr %s310, 128
          %s312 = scalar_lea.hbm %s3, %s311
          %s313 = sshll.u32 %s305, 4
          %s314 = int_to_ptr.vmem [resolvable:$true] %s313
          %319 = dma.hbm_to_vmem [thread:$0]  %s312, 4096, %s314, %s302, 256, 256, 16
        $region32: #{tpu_custom_call.1} parent=19 // pred_fallthru
          _
      $region20: #{tpu_custom_call.1} parent=5 // pred_fallthru
        _
      %p320 = scmp.le.s32.totalorder 1, %s23
      %p321 = scmp.lt.s32.totalorder %s23, 5
      %p322 = pnand %p320, %p321
      %p323 = pneg %p322
      // Predicated region
      $region33: #{tpu_custom_call.1} parent=5 // pred_check
        _
      $region34: #{tpu_custom_call.1} parent=5 // pred_check_branch
        %325 = sbr.rel (%p322) target = $region36
      $region35: #{tpu_custom_call.1} parent=5 // pred_region
        %s326 = ssub.s32 %s23, 1
        %s327 = sand.u32 %s28, 1
        %s328 = scalar_lea.sflag [#allocation3], %s327
        %s329 = sand.u32 %s50, 1
        %s330 = smul.addr %s329, 256
        %s331 = scalar_lea.vmem [#allocation2], %s330
        // Predicated region
        $region37: #{tpu_custom_call.1} parent=35 // pred_check
          %p332 = pneg %p63
        $region38: #{tpu_custom_call.1} parent=35 // pred_check_branch
          %334 = sbr.rel (%p332) target = $region40
        $region39: #{tpu_custom_call.1} parent=35 // pred_region
          %335 = dma.done %s328, 4096
        $region40: #{tpu_custom_call.1} parent=35 // pred_fallthru
          _
        // Predicated region
        $region41: #{tpu_custom_call.1} parent=35 // pred_check
          %p336 = pneg %p84
        $region42: #{tpu_custom_call.1} parent=35 // pred_check_branch
          %338 = sbr.rel (%p336) target = $region44
        $region43: #{tpu_custom_call.1} parent=35 // pred_region
          %339 = dma.done [#allocation6], 20480
        $region44: #{tpu_custom_call.1} parent=35 // pred_fallthru
          _
        %s340 = sand.u32 %s28, 1
        %s341 = scalar_lea.sflag [#allocation3], %s340
        %s342 = sand.u32 %s97, 1
        %s343 = smul.addr %s342, 256
        %s344 = scalar_lea.vmem [#allocation7], %s343
        // Predicated region
        $region45: #{tpu_custom_call.1} parent=35 // pred_check
          %p345 = pneg %p110
        $region46: #{tpu_custom_call.1} parent=35 // pred_check_branch
          %347 = sbr.rel (%p345) target = $region48
        $region47: #{tpu_custom_call.1} parent=35 // pred_region
          %348 = dma.done %s341, 4096
        $region48: #{tpu_custom_call.1} parent=35 // pred_fallthru
          _
        %s349 = sand.u32 %s28, 1
        %s350 = scalar_lea.sflag [#allocation3], %s349
        %s351 = sand.u32 %s123, 1
        %s352 = smul.addr %s351, 256
        %s353 = scalar_lea.vmem [#allocation8], %s352
        // Predicated region
        $region49: #{tpu_custom_call.1} parent=35 // pred_check
          %p354 = pneg %p136
        $region50: #{tpu_custom_call.1} parent=35 // pred_check_branch
          %356 = sbr.rel (%p354) target = $region52
        $region51: #{tpu_custom_call.1} parent=35 // pred_region
          %357 = dma.done %s350, 4096
        $region52: #{tpu_custom_call.1} parent=35 // pred_fallthru
          _
        %s358 = sand.u32 %s28, 1
        %s359 = scalar_lea.sflag [#allocation3], %s358
        %s360 = sand.u32 %s50, 1
        %s361 = smul.addr %s360, 256
        %s362 = scalar_lea.vmem [#allocation2], %s361
        %p363 = pneg %p63
        %p364 = pneg %p60
        %p365 = pneg %p84
        %p366 = pneg %p81
        %s367 = sand.u32 %s28, 1
        %s368 = scalar_lea.sflag [#allocation3], %s367
        %s369 = sand.u32 %s97, 1
        %s370 = smul.addr %s369, 256
        %s371 = scalar_lea.vmem [#allocation7], %s370
        %p372 = pneg %p110
        %p373 = pneg %p107
        %s374 = sand.u32 %s28, 1
        %s375 = scalar_lea.sflag [#allocation3], %s374
        %s376 = sand.u32 %s123, 1
        %s377 = smul.addr %s376, 256
        %s378 = scalar_lea.vmem [#allocation8], %s377
        %p379 = pneg %p136
        %p380 = pneg %p133
        %p381 = pneg %p164
        %p382 = pneg %p161
        %s383 = sand.u32 %s151, 1
        %s384 = scalar_lea.sflag [#allocation4], %s383
        %s385 = sand.u32 %s151, 1
        %s386 = smul.addr %s385, 128
        %s387 = scalar_lea.vmem [#allocation9], %s386
        %p388 = pneg %p192
        %p389 = pneg %p189
        %s390 = sand.u32 %s28, 1
        %s391 = scalar_lea.sflag [#allocation11], %s390
        %s392 = sand.u32 %s179, 1
        %s393 = smul.addr %s392, 128
        %s394 = scalar_lea.vmem [#allocation10], %s393
        %p395 = pneg %p220
        %p396 = pneg %p217
        %s397 = sand.u32 %s28, 1
        %s398 = scalar_lea.sflag [#allocation11], %s397
        %s399 = sand.u32 %s207, 1
        %s400 = smul.addr %s399, 128
        %s401 = scalar_lea.vmem [#allocation12], %s400
        %s402 = smul.u32 16, %s33
        %s403 = smul.u32 16, %s33
        %s404 = smul.u32 16, %s33
        %s405 = smul.u32 16, %s33
        %s406 = smul.u32 16, %s33
        %s407 = smul.u32 16, %s33
        %v408 = vld [vmem:[%s331] sm:$0xff]
        %v409 = vld [vmem:[%s331 + $0x8] sm:$0xff]
        %v410 = vld [vmem:[%s331 + $0x10] sm:$0xff]
        %v411 = vld [vmem:[%s331 + $0x18] sm:$0xff]
        %v412 = vld [vmem:[%s331 + $0x20] sm:$0xff]
        %v413 = vld [vmem:[%s331 + $0x28] sm:$0xff]
        %v414 = vld [vmem:[%s331 + $0x30] sm:$0xff]
        %v415 = vld [vmem:[%s331 + $0x38] sm:$0xff]
        %v416 = vld [vmem:[%s331 + $0x40] sm:$0xff]
        %v417 = vld [vmem:[%s331 + $0x48] sm:$0xff]
        %v418 = vld [vmem:[%s331 + $0x50] sm:$0xff]
        %v419 = vld [vmem:[%s331 + $0x58] sm:$0xff]
        %v420 = vld [vmem:[%s331 + $0x60] sm:$0xff]
        %v421 = vld [vmem:[%s331 + $0x68] sm:$0xff]
        %v422 = vld [vmem:[%s331 + $0x70] sm:$0xff]
        %v423 = vld [vmem:[%s331 + $0x78] sm:$0xff]
        %v424 = vld [vmem:[%s331 + $0x80] sm:$0xff]
        %v425 = vld [vmem:[%s331 + $0x88] sm:$0xff]
        %v426 = vld [vmem:[%s331 + $0x90] sm:$0xff]
        %v427 = vld [vmem:[%s331 + $0x98] sm:$0xff]
        %v428 = vld [vmem:[%s331 + $0xa0] sm:$0xff]
        %v429 = vld [vmem:[%s331 + $0xa8] sm:$0xff]
        %v430 = vld [vmem:[%s331 + $0xb0] sm:$0xff]
        %v431 = vld [vmem:[%s331 + $0xb8] sm:$0xff]
        %v432 = vld [vmem:[%s331 + $0xc0] sm:$0xff]
        %v433 = vld [vmem:[%s331 + $0xc8] sm:$0xff]
        %v434 = vld [vmem:[%s331 + $0xd0] sm:$0xff]
        %v435 = vld [vmem:[%s331 + $0xd8] sm:$0xff]
        %v436 = vld [vmem:[%s331 + $0xe0] sm:$0xff]
        %v437 = vld [vmem:[%s331 + $0xe8] sm:$0xff]
        %v438 = vld [vmem:[%s331 + $0xf0] sm:$0xff]
        %v439 = vld [vmem:[%s331 + $0xf8] sm:$0xff]
        %v440 = vmul.f32 %v408, %v408
        %v441 = vmul.f32 %v409, %v409
        %v442 = vmul.f32 %v410, %v410
        %v443 = vmul.f32 %v411, %v411
        %v444 = vmul.f32 %v412, %v412
        %v445 = vmul.f32 %v413, %v413
        %v446 = vmul.f32 %v414, %v414
        %v447 = vmul.f32 %v415, %v415
        %v448 = vmul.f32 %v416, %v416
        %v449 = vmul.f32 %v417, %v417
        %v450 = vmul.f32 %v418, %v418
        %v451 = vmul.f32 %v419, %v419
        %v452 = vmul.f32 %v420, %v420
        %v453 = vmul.f32 %v421, %v421
        %v454 = vmul.f32 %v422, %v422
        %v455 = vmul.f32 %v423, %v423
        %v456 = vmul.f32 %v424, %v424
        %v457 = vmul.f32 %v425, %v425
        %v458 = vmul.f32 %v426, %v426
        %v459 = vmul.f32 %v427, %v427
        %v460 = vmul.f32 %v428, %v428
        %v461 = vmul.f32 %v429, %v429
        %v462 = vmul.f32 %v430, %v430
        %v463 = vmul.f32 %v431, %v431
        %v464 = vmul.f32 %v432, %v432
        %v465 = vmul.f32 %v433, %v433
        %v466 = vmul.f32 %v434, %v434
        %v467 = vmul.f32 %v435, %v435
        %v468 = vmul.f32 %v436, %v436
        %v469 = vmul.f32 %v437, %v437
        %v470 = vmul.f32 %v438, %v438
        %v471 = vmul.f32 %v439, %v439
        %v472 = vadd.f32 %v440, %v441
        %473 = vadd.xlane.f32.xlu0 %v472
        %v474 = vpop.xlane.xlu0 %473
        %v475 = vadd.f32 %v442, %v443
        %476 = vadd.xlane.f32.xlu0 %v475
        %v477 = vpop.xlane.xlu0 %476
        %v478 = vadd.f32 %v444, %v445
        %479 = vadd.xlane.f32.xlu0 %v478
        %v480 = vpop.xlane.xlu0 %479
        %v481 = vadd.f32 %v446, %v447
        %482 = vadd.xlane.f32.xlu0 %v481
        %v483 = vpop.xlane.xlu0 %482
        %v484 = vadd.f32 %v448, %v449
        %485 = vadd.xlane.f32.xlu0 %v484
        %v486 = vpop.xlane.xlu0 %485
        %v487 = vadd.f32 %v450, %v451
        %488 = vadd.xlane.f32.xlu0 %v487
        %v489 = vpop.xlane.xlu0 %488
        %v490 = vadd.f32 %v452, %v453
        %491 = vadd.xlane.f32.xlu0 %v490
        %v492 = vpop.xlane.xlu0 %491
        %v493 = vadd.f32 %v454, %v455
        %494 = vadd.xlane.f32.xlu0 %v493
        %v495 = vpop.xlane.xlu0 %494
        %v496 = vadd.f32 %v456, %v457
        %497 = vadd.xlane.f32.xlu0 %v496
        %v498 = vpop.xlane.xlu0 %497
        %v499 = vadd.f32 %v458, %v459
        %500 = vadd.xlane.f32.xlu0 %v499
        %v501 = vpop.xlane.xlu0 %500
        %v502 = vadd.f32 %v460, %v461
        %503 = vadd.xlane.f32.xlu0 %v502
        %v504 = vpop.xlane.xlu0 %503
        %v505 = vadd.f32 %v462, %v463
        %506 = vadd.xlane.f32.xlu0 %v505
        %v507 = vpop.xlane.xlu0 %506
        %v508 = vadd.f32 %v464, %v465
        %509 = vadd.xlane.f32.xlu0 %v508
        %v510 = vpop.xlane.xlu0 %509
        %v511 = vadd.f32 %v466, %v467
        %512 = vadd.xlane.f32.xlu0 %v511
        %v513 = vpop.xlane.xlu0 %512
        %v514 = vadd.f32 %v468, %v469
        %515 = vadd.xlane.f32.xlu0 %v514
        %v516 = vpop.xlane.xlu0 %515
        %v517 = vadd.f32 %v470, %v471
        %518 = vadd.xlane.f32.xlu0 %v517
        %v519 = vpop.xlane.xlu0 %518
        %v520 = vrcp.pop 256.0
        %v521 = vmul.f32 %v474, %v520
        %v522 = vmul.f32 %v477, %v520
        %v523 = vmul.f32 %v480, %v520
        %v524 = vmul.f32 %v483, %v520
        %v525 = vmul.f32 %v486, %v520
        %v526 = vmul.f32 %v489, %v520
        %v527 = vmul.f32 %v492, %v520
        %v528 = vmul.f32 %v495, %v520
        %v529 = vmul.f32 %v498, %v520
        %v530 = vmul.f32 %v501, %v520
        %v531 = vmul.f32 %v504, %v520
        %v532 = vmul.f32 %v507, %v520
        %v533 = vmul.f32 %v510, %v520
        %v534 = vmul.f32 %v513, %v520
        %v535 = vmul.f32 %v516, %v520
        %v536 = vmul.f32 %v519, %v520
        %v537 = vadd.f32 %v521, 1e-06
        %v538 = vadd.f32 %v522, 1e-06
        %v539 = vadd.f32 %v523, 1e-06
        %v540 = vadd.f32 %v524, 1e-06
        %v541 = vadd.f32 %v525, 1e-06
        %v542 = vadd.f32 %v526, 1e-06
        %v543 = vadd.f32 %v527, 1e-06
        %v544 = vadd.f32 %v528, 1e-06
        %v545 = vadd.f32 %v529, 1e-06
        %v546 = vadd.f32 %v530, 1e-06
        %v547 = vadd.f32 %v531, 1e-06
        %v548 = vadd.f32 %v532, 1e-06
        %v549 = vadd.f32 %v533, 1e-06
        %v550 = vadd.f32 %v534, 1e-06
        %v551 = vadd.f32 %v535, 1e-06
        %v552 = vadd.f32 %v536, 1e-06
        %v553 = vrsqrt.pop %v537
        %v554 = vrsqrt.pop %v538
        %v555 = vrsqrt.pop %v539
        %v556 = vrsqrt.pop %v540
        %v557 = vrsqrt.pop %v541
        %v558 = vrsqrt.pop %v542
        %v559 = vrsqrt.pop %v543
        %v560 = vrsqrt.pop %v544
        %v561 = vrsqrt.pop %v545
        %v562 = vrsqrt.pop %v546
        %v563 = vrsqrt.pop %v547
        %v564 = vrsqrt.pop %v548
        %v565 = vrsqrt.pop %v549
        %v566 = vrsqrt.pop %v550
        %v567 = vrsqrt.pop %v551
        %v568 = vrsqrt.pop %v552
        %v569 = vmul.f32 %v408, %v553
        %v570 = vmul.f32 %v409, %v553
        %v571 = vmul.f32 %v410, %v554
        %v572 = vmul.f32 %v411, %v554
        %v573 = vmul.f32 %v412, %v555
        %v574 = vmul.f32 %v413, %v555
        %v575 = vmul.f32 %v414, %v556
        %v576 = vmul.f32 %v415, %v556
        %v577 = vmul.f32 %v416, %v557
        %v578 = vmul.f32 %v417, %v557
        %v579 = vmul.f32 %v418, %v558
        %v580 = vmul.f32 %v419, %v558
        %v581 = vmul.f32 %v420, %v559
        %v582 = vmul.f32 %v421, %v559
        %v583 = vmul.f32 %v422, %v560
        %v584 = vmul.f32 %v423, %v560
        %v585 = vmul.f32 %v424, %v561
        %v586 = vmul.f32 %v425, %v561
        %v587 = vmul.f32 %v426, %v562
        %v588 = vmul.f32 %v427, %v562
        %v589 = vmul.f32 %v428, %v563
        %v590 = vmul.f32 %v429, %v563
        %v591 = vmul.f32 %v430, %v564
        %v592 = vmul.f32 %v431, %v564
        %v593 = vmul.f32 %v432, %v565
        %v594 = vmul.f32 %v433, %v565
        %v595 = vmul.f32 %v434, %v566
        %v596 = vmul.f32 %v435, %v566
        %v597 = vmul.f32 %v436, %v567
        %v598 = vmul.f32 %v437, %v567
        %v599 = vmul.f32 %v438, %v568
        %v600 = vmul.f32 %v439, %v568
        %v601 = vpack.c.bf16 %v571, %v569
        %v602 = vpack.c.bf16 %v572, %v570
        %v603 = vpack.c.bf16 %v575, %v573
        %v604 = vpack.c.bf16 %v576, %v574
        %v605 = vpack.c.bf16 %v579, %v577
        %v606 = vpack.c.bf16 %v580, %v578
        %v607 = vpack.c.bf16 %v583, %v581
        %v608 = vpack.c.bf16 %v584, %v582
        %v609 = vpack.c.bf16 %v587, %v585
        %v610 = vpack.c.bf16 %v588, %v586
        %v611 = vpack.c.bf16 %v591, %v589
        %v612 = vpack.c.bf16 %v592, %v590
        %v613 = vpack.c.bf16 %v595, %v593
        %v614 = vpack.c.bf16 %v596, %v594
        %v615 = vpack.c.bf16 %v599, %v597
        %v616 = vpack.c.bf16 %v600, %v598
        %v617 = vld [vmem:[#allocation5] sm:$0xff]
        %v618 = vld [vmem:[#allocation5 + $0x8] sm:$0xff]
        %v619 = vld [vmem:[#allocation5 + $0x10] sm:$0xff]
        %v620 = vld [vmem:[#allocation5 + $0x18] sm:$0xff]
        %v621 = vld [vmem:[#allocation5 + $0x20] sm:$0xff]
        %v622 = vld [vmem:[#allocation5 + $0x28] sm:$0xff]
        %v623 = vld [vmem:[#allocation5 + $0x30] sm:$0xff]
        %v624 = vld [vmem:[#allocation5 + $0x38] sm:$0xff]
        %v625 = vld [vmem:[#allocation5 + $0x40] sm:$0xff]
        %v626 = vld [vmem:[#allocation5 + $0x48] sm:$0xff]
        %v627 = vld [vmem:[#allocation5 + $0x50] sm:$0xff]
        %v628 = vld [vmem:[#allocation5 + $0x58] sm:$0xff]
        %v629 = vld [vmem:[#allocation5 + $0x60] sm:$0xff]
        %v630 = vld [vmem:[#allocation5 + $0x68] sm:$0xff]
        %v631 = vld [vmem:[#allocation5 + $0x70] sm:$0xff]
        %v632 = vld [vmem:[#allocation5 + $0x78] sm:$0xff]
        %v633 = vld [vmem:[#allocation5 + $0x80] sm:$0xff]
        %v634 = vld [vmem:[#allocation5 + $0x88] sm:$0xff]
        %v635 = vld [vmem:[#allocation5 + $0x90] sm:$0xff]
        %v636 = vld [vmem:[#allocation5 + $0x98] sm:$0xff]
        %v637 = vld [vmem:[#allocation5 + $0xa0] sm:$0xff]
        %v638 = vld [vmem:[#allocation5 + $0xa8] sm:$0xff]
        %v639 = vld [vmem:[#allocation5 + $0xb0] sm:$0xff]
        %v640 = vld [vmem:[#allocation5 + $0xb8] sm:$0xff]
        %v641 = vld [vmem:[#allocation5 + $0xc0] sm:$0xff]
        %v642 = vld [vmem:[#allocation5 + $0xc8] sm:$0xff]
        %v643 = vld [vmem:[#allocation5 + $0xd0] sm:$0xff]
        %v644 = vld [vmem:[#allocation5 + $0xd8] sm:$0xff]
        %v645 = vld [vmem:[#allocation5 + $0xe0] sm:$0xff]
        %v646 = vld [vmem:[#allocation5 + $0xe8] sm:$0xff]
        %v647 = vld [vmem:[#allocation5 + $0xf0] sm:$0xff]
        %v648 = vld [vmem:[#allocation5 + $0xf8] sm:$0xff]
        %v649 = vld [vmem:[#allocation5 + $0x100] sm:$0xff]
        %v650 = vld [vmem:[#allocation5 + $0x108] sm:$0xff]
        %v651 = vld [vmem:[#allocation5 + $0x110] sm:$0xff]
        %v652 = vld [vmem:[#allocation5 + $0x118] sm:$0xff]
        %v653 = vld [vmem:[#allocation5 + $0x120] sm:$0xff]
        %v654 = vld [vmem:[#allocation5 + $0x128] sm:$0xff]
        %v655 = vld [vmem:[#allocation5 + $0x130] sm:$0xff]
        %v656 = vld [vmem:[#allocation5 + $0x138] sm:$0xff]
        %v657 = vld [vmem:[#allocation5 + $0x140] sm:$0xff]
        %v658 = vld [vmem:[#allocation5 + $0x148] sm:$0xff]
        %v659 = vld [vmem:[#allocation5 + $0x150] sm:$0xff]
        %v660 = vld [vmem:[#allocation5 + $0x158] sm:$0xff]
        %v661 = vld [vmem:[#allocation5 + $0x160] sm:$0xff]
        %v662 = vld [vmem:[#allocation5 + $0x168] sm:$0xff]
        %v663 = vld [vmem:[#allocation5 + $0x170] sm:$0xff]
        %v664 = vld [vmem:[#allocation5 + $0x178] sm:$0xff]
        %v665 = vld [vmem:[#allocation5 + $0x180] sm:$0xff]
        %v666 = vld [vmem:[#allocation5 + $0x188] sm:$0xff]
        %v667 = vld [vmem:[#allocation5 + $0x190] sm:$0xff]
        %v668 = vld [vmem:[#allocation5 + $0x198] sm:$0xff]
        %v669 = vld [vmem:[#allocation5 + $0x1a0] sm:$0xff]
        %v670 = vld [vmem:[#allocation5 + $0x1a8] sm:$0xff]
        %v671 = vld [vmem:[#allocation5 + $0x1b0] sm:$0xff]
        %v672 = vld [vmem:[#allocation5 + $0x1b8] sm:$0xff]
        %v673 = vld [vmem:[#allocation5 + $0x1c0] sm:$0xff]
        %v674 = vld [vmem:[#allocation5 + $0x1c8] sm:$0xff]
        %v675 = vld [vmem:[#allocation5 + $0x1d0] sm:$0xff]
        %v676 = vld [vmem:[#allocation5 + $0x1d8] sm:$0xff]
        %v677 = vld [vmem:[#allocation5 + $0x1e0] sm:$0xff]
        %v678 = vld [vmem:[#allocation5 + $0x1e8] sm:$0xff]
        %v679 = vld [vmem:[#allocation5 + $0x1f0] sm:$0xff]
        %v680 = vld [vmem:[#allocation5 + $0x1f8] sm:$0xff]
        %v681 = vld [vmem:[#allocation5 + $0x200] sm:$0xff]
        %v682 = vld [vmem:[#allocation5 + $0x208] sm:$0xff]
        %v683 = vld [vmem:[#allocation5 + $0x210] sm:$0xff]
        %v684 = vld [vmem:[#allocation5 + $0x218] sm:$0xff]
        %v685 = vld [vmem:[#allocation5 + $0x220] sm:$0xff]
        %v686 = vld [vmem:[#allocation5 + $0x228] sm:$0xff]
        %v687 = vld [vmem:[#allocation5 + $0x230] sm:$0xff]
        %v688 = vld [vmem:[#allocation5 + $0x238] sm:$0xff]
        %v689 = vld [vmem:[#allocation5 + $0x240] sm:$0xff]
        %v690 = vld [vmem:[#allocation5 + $0x248] sm:$0xff]
        %v691 = vld [vmem:[#allocation5 + $0x250] sm:$0xff]
        %v692 = vld [vmem:[#allocation5 + $0x258] sm:$0xff]
        %v693 = vld [vmem:[#allocation5 + $0x260] sm:$0xff]
        %v694 = vld [vmem:[#allocation5 + $0x268] sm:$0xff]
        %v695 = vld [vmem:[#allocation5 + $0x270] sm:$0xff]
        %v696 = vld [vmem:[#allocation5 + $0x278] sm:$0xff]
        %v697 = vld [vmem:[#allocation5 + $0x280] sm:$0xff]
        %v698 = vld [vmem:[#allocation5 + $0x288] sm:$0xff]
        %v699 = vld [vmem:[#allocation5 + $0x290] sm:$0xff]
        %v700 = vld [vmem:[#allocation5 + $0x298] sm:$0xff]
        %v701 = vld [vmem:[#allocation5 + $0x2a0] sm:$0xff]
        %v702 = vld [vmem:[#allocation5 + $0x2a8] sm:$0xff]
        %v703 = vld [vmem:[#allocation5 + $0x2b0] sm:$0xff]
        %v704 = vld [vmem:[#allocation5 + $0x2b8] sm:$0xff]
        %v705 = vld [vmem:[#allocation5 + $0x2c0] sm:$0xff]
        %v706 = vld [vmem:[#allocation5 + $0x2c8] sm:$0xff]
        %v707 = vld [vmem:[#allocation5 + $0x2d0] sm:$0xff]
        %v708 = vld [vmem:[#allocation5 + $0x2d8] sm:$0xff]
        %v709 = vld [vmem:[#allocation5 + $0x2e0] sm:$0xff]
        %v710 = vld [vmem:[#allocation5 + $0x2e8] sm:$0xff]
        %v711 = vld [vmem:[#allocation5 + $0x2f0] sm:$0xff]
        %v712 = vld [vmem:[#allocation5 + $0x2f8] sm:$0xff]
        %v713 = vld [vmem:[#allocation5 + $0x300] sm:$0xff]
        %v714 = vld [vmem:[#allocation5 + $0x308] sm:$0xff]
        %v715 = vld [vmem:[#allocation5 + $0x310] sm:$0xff]
        %v716 = vld [vmem:[#allocation5 + $0x318] sm:$0xff]
        %v717 = vld [vmem:[#allocation5 + $0x320] sm:$0xff]
        %v718 = vld [vmem:[#allocation5 + $0x328] sm:$0xff]
        %v719 = vld [vmem:[#allocation5 + $0x330] sm:$0xff]
        %v720 = vld [vmem:[#allocation5 + $0x338] sm:$0xff]
        %v721 = vld [vmem:[#allocation5 + $0x340] sm:$0xff]
        %v722 = vld [vmem:[#allocation5 + $0x348] sm:$0xff]
        %v723 = vld [vmem:[#allocation5 + $0x350] sm:$0xff]
        %v724 = vld [vmem:[#allocation5 + $0x358] sm:$0xff]
        %v725 = vld [vmem:[#allocation5 + $0x360] sm:$0xff]
        %v726 = vld [vmem:[#allocation5 + $0x368] sm:$0xff]
        %v727 = vld [vmem:[#allocation5 + $0x370] sm:$0xff]
        %v728 = vld [vmem:[#allocation5 + $0x378] sm:$0xff]
        %v729 = vld [vmem:[#allocation5 + $0x380] sm:$0xff]
        %v730 = vld [vmem:[#allocation5 + $0x388] sm:$0xff]
        %v731 = vld [vmem:[#allocation5 + $0x390] sm:$0xff]
        %v732 = vld [vmem:[#allocation5 + $0x398] sm:$0xff]
        %v733 = vld [vmem:[#allocation5 + $0x3a0] sm:$0xff]
        %v734 = vld [vmem:[#allocation5 + $0x3a8] sm:$0xff]
        %v735 = vld [vmem:[#allocation5 + $0x3b0] sm:$0xff]
        %v736 = vld [vmem:[#allocation5 + $0x3b8] sm:$0xff]
        %v737 = vld [vmem:[#allocation5 + $0x3c0] sm:$0xff]
        %v738 = vld [vmem:[#allocation5 + $0x3c8] sm:$0xff]
        %v739 = vld [vmem:[#allocation5 + $0x3d0] sm:$0xff]
        %v740 = vld [vmem:[#allocation5 + $0x3d8] sm:$0xff]
        %v741 = vld [vmem:[#allocation5 + $0x3e0] sm:$0xff]
        %v742 = vld [vmem:[#allocation5 + $0x3e8] sm:$0xff]
        %v743 = vld [vmem:[#allocation5 + $0x3f0] sm:$0xff]
        %v744 = vld [vmem:[#allocation5 + $0x3f8] sm:$0xff]
        %v745 = vld [vmem:[#allocation5 + $0x400] sm:$0xff]
        %v746 = vld [vmem:[#allocation5 + $0x408] sm:$0xff]
        %v747 = vld [vmem:[#allocation5 + $0x410] sm:$0xff]
        %v748 = vld [vmem:[#allocation5 + $0x418] sm:$0xff]
        %v749 = vld [vmem:[#allocation5 + $0x420] sm:$0xff]
        %v750 = vld [vmem:[#allocation5 + $0x428] sm:$0xff]
        %v751 = vld [vmem:[#allocation5 + $0x430] sm:$0xff]
        %v752 = vld [vmem:[#allocation5 + $0x438] sm:$0xff]
        %v753 = vld [vmem:[#allocation5 + $0x440] sm:$0xff]
        %v754 = vld [vmem:[#allocation5 + $0x448] sm:$0xff]
        %v755 = vld [vmem:[#allocation5 + $0x450] sm:$0xff]
        %v756 = vld [vmem:[#allocation5 + $0x458] sm:$0xff]
        %v757 = vld [vmem:[#allocation5 + $0x460] sm:$0xff]
        %v758 = vld [vmem:[#allocation5 + $0x468] sm:$0xff]
        %v759 = vld [vmem:[#allocation5 + $0x470] sm:$0xff]
        %v760 = vld [vmem:[#allocation5 + $0x478] sm:$0xff]
        %v761 = vld [vmem:[#allocation5 + $0x480] sm:$0xff]
        %v762 = vld [vmem:[#allocation5 + $0x488] sm:$0xff]
        %v763 = vld [vmem:[#allocation5 + $0x490] sm:$0xff]
        %v764 = vld [vmem:[#allocation5 + $0x498] sm:$0xff]
        %v765 = vld [vmem:[#allocation5 + $0x4a0] sm:$0xff]
        %v766 = vld [vmem:[#allocation5 + $0x4a8] sm:$0xff]
        %v767 = vld [vmem:[#allocation5 + $0x4b0] sm:$0xff]
        %v768 = vld [vmem:[#allocation5 + $0x4b8] sm:$0xff]
        %v769 = vld [vmem:[#allocation5 + $0x4c0] sm:$0xff]
        %v770 = vld [vmem:[#allocation5 + $0x4c8] sm:$0xff]
        %v771 = vld [vmem:[#allocation5 + $0x4d0] sm:$0xff]
        %v772 = vld [vmem:[#allocation5 + $0x4d8] sm:$0xff]
        %v773 = vld [vmem:[#allocation5 + $0x4e0] sm:$0xff]
        %v774 = vld [vmem:[#allocation5 + $0x4e8] sm:$0xff]
        %v775 = vld [vmem:[#allocation5 + $0x4f0] sm:$0xff]
        %v776 = vld [vmem:[#allocation5 + $0x4f8] sm:$0xff]
        %v937 = vunpack.c.l.b16 %v617
        %v938 = vunpack.c.h.b16 %v617
        %v939 = vunpack.c.l.b16 %v618
        %v940 = vunpack.c.h.b16 %v618
        %v941 = vunpack.c.l.b16 %v619
        %v942 = vunpack.c.h.b16 %v619
        %v943 = vunpack.c.l.b16 %v620
        %v944 = vunpack.c.h.b16 %v620
        %v945 = vunpack.c.l.b16 %v621
        %v946 = vunpack.c.h.b16 %v621
        %v947 = vunpack.c.l.b16 %v622
        %v948 = vunpack.c.h.b16 %v622
        %v949 = vunpack.c.l.b16 %v623
        %v950 = vunpack.c.h.b16 %v623
        %v951 = vunpack.c.l.b16 %v624
        %v952 = vunpack.c.h.b16 %v624
        %v953 = vunpack.c.l.b16 %v625
        %v954 = vunpack.c.h.b16 %v625
        %v955 = vunpack.c.l.b16 %v626
        %v956 = vunpack.c.h.b16 %v626
        %v957 = vunpack.c.l.b16 %v627
        %v958 = vunpack.c.h.b16 %v627
        %v959 = vunpack.c.l.b16 %v628
        %v960 = vunpack.c.h.b16 %v628
        %v961 = vunpack.c.l.b16 %v629
        %v962 = vunpack.c.h.b16 %v629
        %v963 = vunpack.c.l.b16 %v630
        %v964 = vunpack.c.h.b16 %v630
        %v965 = vunpack.c.l.b16 %v631
        %v966 = vunpack.c.h.b16 %v631
        %v967 = vunpack.c.l.b16 %v632
        %v968 = vunpack.c.h.b16 %v632
        %v969 = vunpack.c.l.b16 %v633
        %v970 = vunpack.c.h.b16 %v633
        %v971 = vunpack.c.l.b16 %v634
        %v972 = vunpack.c.h.b16 %v634
        %v973 = vunpack.c.l.b16 %v635
        %v974 = vunpack.c.h.b16 %v635
        %v975 = vunpack.c.l.b16 %v636
        %v976 = vunpack.c.h.b16 %v636
        %v977 = vunpack.c.l.b16 %v637
        %v978 = vunpack.c.h.b16 %v637
        %v979 = vunpack.c.l.b16 %v638
        %v980 = vunpack.c.h.b16 %v638
        %v981 = vunpack.c.l.b16 %v639
        %v982 = vunpack.c.h.b16 %v639
        %v983 = vunpack.c.l.b16 %v640
        %v984 = vunpack.c.h.b16 %v640
        %v985 = vunpack.c.l.b16 %v641
        %v986 = vunpack.c.h.b16 %v641
        %v987 = vunpack.c.l.b16 %v642
        %v988 = vunpack.c.h.b16 %v642
        %v989 = vunpack.c.l.b16 %v643
        %v990 = vunpack.c.h.b16 %v643
        %v991 = vunpack.c.l.b16 %v644
        %v992 = vunpack.c.h.b16 %v644
        %v993 = vunpack.c.l.b16 %v645
        %v994 = vunpack.c.h.b16 %v645
        %v995 = vunpack.c.l.b16 %v646
        %v996 = vunpack.c.h.b16 %v646
        %v997 = vunpack.c.l.b16 %v647
        %v998 = vunpack.c.h.b16 %v647
        %v999 = vunpack.c.l.b16 %v648
        %v1000 = vunpack.c.h.b16 %v648
        %v1001 = vunpack.c.l.b16 %v649
        %v1002 = vunpack.c.h.b16 %v649
        %v1003 = vunpack.c.l.b16 %v650
        %v1004 = vunpack.c.h.b16 %v650
        %v1005 = vunpack.c.l.b16 %v651
        %v1006 = vunpack.c.h.b16 %v651
        %v1007 = vunpack.c.l.b16 %v652
        %v1008 = vunpack.c.h.b16 %v652
        %v1009 = vunpack.c.l.b16 %v653
        %v1010 = vunpack.c.h.b16 %v653
        %v1011 = vunpack.c.l.b16 %v654
        %v1012 = vunpack.c.h.b16 %v654
        %v1013 = vunpack.c.l.b16 %v655
        %v1014 = vunpack.c.h.b16 %v655
        %v1015 = vunpack.c.l.b16 %v656
        %v1016 = vunpack.c.h.b16 %v656
        %v1017 = vunpack.c.l.b16 %v657
        %v1018 = vunpack.c.h.b16 %v657
        %v1019 = vunpack.c.l.b16 %v658
        %v1020 = vunpack.c.h.b16 %v658
        %v1021 = vunpack.c.l.b16 %v659
        %v1022 = vunpack.c.h.b16 %v659
        %v1023 = vunpack.c.l.b16 %v660
        %v1024 = vunpack.c.h.b16 %v660
        %v1025 = vunpack.c.l.b16 %v661
        %v1026 = vunpack.c.h.b16 %v661
        %v1027 = vunpack.c.l.b16 %v662
        %v1028 = vunpack.c.h.b16 %v662
        %v1029 = vunpack.c.l.b16 %v663
        %v1030 = vunpack.c.h.b16 %v663
        %v1031 = vunpack.c.l.b16 %v664
        %v1032 = vunpack.c.h.b16 %v664
        %v1033 = vunpack.c.l.b16 %v665
        %v1034 = vunpack.c.h.b16 %v665
        %v1035 = vunpack.c.l.b16 %v666
        %v1036 = vunpack.c.h.b16 %v666
        %v1037 = vunpack.c.l.b16 %v667
        %v1038 = vunpack.c.h.b16 %v667
        %v1039 = vunpack.c.l.b16 %v668
        %v1040 = vunpack.c.h.b16 %v668
        %v1041 = vunpack.c.l.b16 %v669
        %v1042 = vunpack.c.h.b16 %v669
        %v1043 = vunpack.c.l.b16 %v670
        %v1044 = vunpack.c.h.b16 %v670
        %v1045 = vunpack.c.l.b16 %v671
        %v1046 = vunpack.c.h.b16 %v671
        %v1047 = vunpack.c.l.b16 %v672
        %v1048 = vunpack.c.h.b16 %v672
        %v1049 = vunpack.c.l.b16 %v673
        %v1050 = vunpack.c.h.b16 %v673
        %v1051 = vunpack.c.l.b16 %v674
        %v1052 = vunpack.c.h.b16 %v674
        %v1053 = vunpack.c.l.b16 %v675
        %v1054 = vunpack.c.h.b16 %v675
        %v1055 = vunpack.c.l.b16 %v676
        %v1056 = vunpack.c.h.b16 %v676
        %v1057 = vunpack.c.l.b16 %v677
        %v1058 = vunpack.c.h.b16 %v677
        %v1059 = vunpack.c.l.b16 %v678
        %v1060 = vunpack.c.h.b16 %v678
        %v1061 = vunpack.c.l.b16 %v679
        %v1062 = vunpack.c.h.b16 %v679
        %v1063 = vunpack.c.l.b16 %v680
        %v1064 = vunpack.c.h.b16 %v680
        %v1065 = vunpack.c.l.b16 %v681
        %v1066 = vunpack.c.h.b16 %v681
        %v1067 = vunpack.c.l.b16 %v682
        %v1068 = vunpack.c.h.b16 %v682
        %v1069 = vunpack.c.l.b16 %v683
        %v1070 = vunpack.c.h.b16 %v683
        %v1071 = vunpack.c.l.b16 %v684
        %v1072 = vunpack.c.h.b16 %v684
        %v1073 = vunpack.c.l.b16 %v685
        %v1074 = vunpack.c.h.b16 %v685
        %v1075 = vunpack.c.l.b16 %v686
        %v1076 = vunpack.c.h.b16 %v686
        %v1077 = vunpack.c.l.b16 %v687
        %v1078 = vunpack.c.h.b16 %v687
        %v1079 = vunpack.c.l.b16 %v688
        %v1080 = vunpack.c.h.b16 %v688
        %v1081 = vunpack.c.l.b16 %v689
        %v1082 = vunpack.c.h.b16 %v689
        %v1083 = vunpack.c.l.b16 %v690
        %v1084 = vunpack.c.h.b16 %v690
        %v1085 = vunpack.c.l.b16 %v691
        %v1086 = vunpack.c.h.b16 %v691
        %v1087 = vunpack.c.l.b16 %v692
        %v1088 = vunpack.c.h.b16 %v692
        %v1089 = vunpack.c.l.b16 %v693
        %v1090 = vunpack.c.h.b16 %v693
        %v1091 = vunpack.c.l.b16 %v694
        %v1092 = vunpack.c.h.b16 %v694
        %v1093 = vunpack.c.l.b16 %v695
        %v1094 = vunpack.c.h.b16 %v695
        %v1095 = vunpack.c.l.b16 %v696
        %v1096 = vunpack.c.h.b16 %v696
        %v1097 = vunpack.c.l.b16 %v697
        %v1098 = vunpack.c.h.b16 %v697
        %v1099 = vunpack.c.l.b16 %v698
        %v1100 = vunpack.c.h.b16 %v698
        %v1101 = vunpack.c.l.b16 %v699
        %v1102 = vunpack.c.h.b16 %v699
        %v1103 = vunpack.c.l.b16 %v700
        %v1104 = vunpack.c.h.b16 %v700
        %v1105 = vunpack.c.l.b16 %v701
        %v1106 = vunpack.c.h.b16 %v701
        %v1107 = vunpack.c.l.b16 %v702
        %v1108 = vunpack.c.h.b16 %v702
        %v1109 = vunpack.c.l.b16 %v703
        %v1110 = vunpack.c.h.b16 %v703
        %v1111 = vunpack.c.l.b16 %v704
        %v1112 = vunpack.c.h.b16 %v704
        %v1113 = vunpack.c.l.b16 %v705
        %v1114 = vunpack.c.h.b16 %v705
        %v1115 = vunpack.c.l.b16 %v706
        %v1116 = vunpack.c.h.b16 %v706
        %v1117 = vunpack.c.l.b16 %v707
        %v1118 = vunpack.c.h.b16 %v707
        %v1119 = vunpack.c.l.b16 %v708
        %v1120 = vunpack.c.h.b16 %v708
        %v1121 = vunpack.c.l.b16 %v709
        %v1122 = vunpack.c.h.b16 %v709
        %v1123 = vunpack.c.l.b16 %v710
        %v1124 = vunpack.c.h.b16 %v710
        %v1125 = vunpack.c.l.b16 %v711
        %v1126 = vunpack.c.h.b16 %v711
        %v1127 = vunpack.c.l.b16 %v712
        %v1128 = vunpack.c.h.b16 %v712
        %v1129 = vunpack.c.l.b16 %v713
        %v1130 = vunpack.c.h.b16 %v713
        %v1131 = vunpack.c.l.b16 %v714
        %v1132 = vunpack.c.h.b16 %v714
        %v1133 = vunpack.c.l.b16 %v715
        %v1134 = vunpack.c.h.b16 %v715
        %v1135 = vunpack.c.l.b16 %v716
        %v1136 = vunpack.c.h.b16 %v716
        %v1137 = vunpack.c.l.b16 %v717
        %v1138 = vunpack.c.h.b16 %v717
        %v1139 = vunpack.c.l.b16 %v718
        %v1140 = vunpack.c.h.b16 %v718
        %v1141 = vunpack.c.l.b16 %v719
        %v1142 = vunpack.c.h.b16 %v719
        %v1143 = vunpack.c.l.b16 %v720
        %v1144 = vunpack.c.h.b16 %v720
        %v1145 = vunpack.c.l.b16 %v721
        %v1146 = vunpack.c.h.b16 %v721
        %v1147 = vunpack.c.l.b16 %v722
        %v1148 = vunpack.c.h.b16 %v722
        %v1149 = vunpack.c.l.b16 %v723
        %v1150 = vunpack.c.h.b16 %v723
        %v1151 = vunpack.c.l.b16 %v724
        %v1152 = vunpack.c.h.b16 %v724
        %v1153 = vunpack.c.l.b16 %v725
        %v1154 = vunpack.c.h.b16 %v725
        %v1155 = vunpack.c.l.b16 %v726
        %v1156 = vunpack.c.h.b16 %v726
        %v1157 = vunpack.c.l.b16 %v727
        %v1158 = vunpack.c.h.b16 %v727
        %v1159 = vunpack.c.l.b16 %v728
        %v1160 = vunpack.c.h.b16 %v728
        %v1161 = vunpack.c.l.b16 %v729
        %v1162 = vunpack.c.h.b16 %v729
        %v1163 = vunpack.c.l.b16 %v730
        %v1164 = vunpack.c.h.b16 %v730
        %v1165 = vunpack.c.l.b16 %v731
        %v1166 = vunpack.c.h.b16 %v731
        %v1167 = vunpack.c.l.b16 %v732
        %v1168 = vunpack.c.h.b16 %v732
        %v1169 = vunpack.c.l.b16 %v733
        %v1170 = vunpack.c.h.b16 %v733
        %v1171 = vunpack.c.l.b16 %v734
        %v1172 = vunpack.c.h.b16 %v734
        %v1173 = vunpack.c.l.b16 %v735
        %v1174 = vunpack.c.h.b16 %v735
        %v1175 = vunpack.c.l.b16 %v736
        %v1176 = vunpack.c.h.b16 %v736
        %v1177 = vunpack.c.l.b16 %v737
        %v1178 = vunpack.c.h.b16 %v737
        %v1179 = vunpack.c.l.b16 %v738
        %v1180 = vunpack.c.h.b16 %v738
        %v1181 = vunpack.c.l.b16 %v739
        %v1182 = vunpack.c.h.b16 %v739
        %v1183 = vunpack.c.l.b16 %v740
        %v1184 = vunpack.c.h.b16 %v740
        %v1185 = vunpack.c.l.b16 %v741
        %v1186 = vunpack.c.h.b16 %v741
        %v1187 = vunpack.c.l.b16 %v742
        %v1188 = vunpack.c.h.b16 %v742
        %v1189 = vunpack.c.l.b16 %v743
        %v1190 = vunpack.c.h.b16 %v743
        %v1191 = vunpack.c.l.b16 %v744
        %v1192 = vunpack.c.h.b16 %v744
        %v1193 = vunpack.c.l.b16 %v745
        %v1194 = vunpack.c.h.b16 %v745
        %v1195 = vunpack.c.l.b16 %v746
        %v1196 = vunpack.c.h.b16 %v746
        %v1197 = vunpack.c.l.b16 %v747
        %v1198 = vunpack.c.h.b16 %v747
        %v1199 = vunpack.c.l.b16 %v748
        %v1200 = vunpack.c.h.b16 %v748
        %v1201 = vunpack.c.l.b16 %v749
        %v1202 = vunpack.c.h.b16 %v749
        %v1203 = vunpack.c.l.b16 %v750
        %v1204 = vunpack.c.h.b16 %v750
        %v1205 = vunpack.c.l.b16 %v751
        %v1206 = vunpack.c.h.b16 %v751
        %v1207 = vunpack.c.l.b16 %v752
        %v1208 = vunpack.c.h.b16 %v752
        %v1209 = vunpack.c.l.b16 %v753
        %v1210 = vunpack.c.h.b16 %v753
        %v1211 = vunpack.c.l.b16 %v754
        %v1212 = vunpack.c.h.b16 %v754
        %v1213 = vunpack.c.l.b16 %v755
        %v1214 = vunpack.c.h.b16 %v755
        %v1215 = vunpack.c.l.b16 %v756
        %v1216 = vunpack.c.h.b16 %v756
        %v1217 = vunpack.c.l.b16 %v757
        %v1218 = vunpack.c.h.b16 %v757
        %v1219 = vunpack.c.l.b16 %v758
        %v1220 = vunpack.c.h.b16 %v758
        %v1221 = vunpack.c.l.b16 %v759
        %v1222 = vunpack.c.h.b16 %v759
        %v1223 = vunpack.c.l.b16 %v760
        %v1224 = vunpack.c.h.b16 %v760
        %v1225 = vunpack.c.l.b16 %v761
        %v1226 = vunpack.c.h.b16 %v761
        %v1227 = vunpack.c.l.b16 %v762
        %v1228 = vunpack.c.h.b16 %v762
        %v1229 = vunpack.c.l.b16 %v763
        %v1230 = vunpack.c.h.b16 %v763
        %v1231 = vunpack.c.l.b16 %v764
        %v1232 = vunpack.c.h.b16 %v764
        %v1233 = vunpack.c.l.b16 %v765
        %v1234 = vunpack.c.h.b16 %v765
        %v1235 = vunpack.c.l.b16 %v766
        %v1236 = vunpack.c.h.b16 %v766
        %v1237 = vunpack.c.l.b16 %v767
        %v1238 = vunpack.c.h.b16 %v767
        %v1239 = vunpack.c.l.b16 %v768
        %v1240 = vunpack.c.h.b16 %v768
        %v1241 = vunpack.c.l.b16 %v769
        %v1242 = vunpack.c.h.b16 %v769
        %v1243 = vunpack.c.l.b16 %v770
        %v1244 = vunpack.c.h.b16 %v770
        %v1245 = vunpack.c.l.b16 %v771
        %v1246 = vunpack.c.h.b16 %v771
        %v1247 = vunpack.c.l.b16 %v772
        %v1248 = vunpack.c.h.b16 %v772
        %v1249 = vunpack.c.l.b16 %v773
        %v1250 = vunpack.c.h.b16 %v773
        %v1251 = vunpack.c.l.b16 %v774
        %v1252 = vunpack.c.h.b16 %v774
        %v1253 = vunpack.c.l.b16 %v775
        %v1254 = vunpack.c.h.b16 %v775
        %v1255 = vunpack.c.l.b16 %v776
        %v1256 = vunpack.c.h.b16 %v776
        %v1257 = vpack.c.b16 %v947, %v937
        %v1258 = vpack.c.b16 %v948, %v938
        %v1259 = vpack.c.b16 %v949, %v939
        %v1260 = vpack.c.b16 %v950, %v940
        %v1261 = vpack.c.b16 %v951, %v941
        %v1262 = vpack.c.b16 %v952, %v942
        %v1263 = vpack.c.b16 %v953, %v943
        %v1264 = vpack.c.b16 %v954, %v944
        %v1265 = vpack.c.b16 %v955, %v945
        %v1266 = vpack.c.b16 %v956, %v946
        %v1267 = vpack.c.b16 %v967, %v957
        %v1268 = vpack.c.b16 %v968, %v958
        %v1269 = vpack.c.b16 %v969, %v959
        %v1270 = vpack.c.b16 %v970, %v960
        %v1271 = vpack.c.b16 %v971, %v961
        %v1272 = vpack.c.b16 %v972, %v962
        %v1273 = vpack.c.b16 %v973, %v963
        %v1274 = vpack.c.b16 %v974, %v964
        %v1275 = vpack.c.b16 %v975, %v965
        %v1276 = vpack.c.b16 %v976, %v966
        %v1277 = vpack.c.b16 %v987, %v977
        %v1278 = vpack.c.b16 %v988, %v978
        %v1279 = vpack.c.b16 %v989, %v979
        %v1280 = vpack.c.b16 %v990, %v980
        %v1281 = vpack.c.b16 %v991, %v981
        %v1282 = vpack.c.b16 %v992, %v982
        %v1283 = vpack.c.b16 %v993, %v983
        %v1284 = vpack.c.b16 %v994, %v984
        %v1285 = vpack.c.b16 %v995, %v985
        %v1286 = vpack.c.b16 %v996, %v986
        %v1287 = vpack.c.b16 %v1007, %v997
        %v1288 = vpack.c.b16 %v1008, %v998
        %v1289 = vpack.c.b16 %v1009, %v999
        %v1290 = vpack.c.b16 %v1010, %v1000
        %v1291 = vpack.c.b16 %v1011, %v1001
        %v1292 = vpack.c.b16 %v1012, %v1002
        %v1293 = vpack.c.b16 %v1013, %v1003
        %v1294 = vpack.c.b16 %v1014, %v1004
        %v1295 = vpack.c.b16 %v1015, %v1005
        %v1296 = vpack.c.b16 %v1016, %v1006
        %v1297 = vpack.c.b16 %v1027, %v1017
        %v1298 = vpack.c.b16 %v1028, %v1018
        %v1299 = vpack.c.b16 %v1029, %v1019
        %v1300 = vpack.c.b16 %v1030, %v1020
        %v1301 = vpack.c.b16 %v1031, %v1021
        %v1302 = vpack.c.b16 %v1032, %v1022
        %v1303 = vpack.c.b16 %v1033, %v1023
        %v1304 = vpack.c.b16 %v1034, %v1024
        %v1305 = vpack.c.b16 %v1035, %v1025
        %v1306 = vpack.c.b16 %v1036, %v1026
        %v1307 = vpack.c.b16 %v1047, %v1037
        %v1308 = vpack.c.b16 %v1048, %v1038
        %v1309 = vpack.c.b16 %v1049, %v1039
        %v1310 = vpack.c.b16 %v1050, %v1040
        %v1311 = vpack.c.b16 %v1051, %v1041
        %v1312 = vpack.c.b16 %v1052, %v1042
        %v1313 = vpack.c.b16 %v1053, %v1043
        %v1314 = vpack.c.b16 %v1054, %v1044
        %v1315 = vpack.c.b16 %v1055, %v1045
        %v1316 = vpack.c.b16 %v1056, %v1046
        %v1317 = vpack.c.b16 %v1067, %v1057
        %v1318 = vpack.c.b16 %v1068, %v1058
        %v1319 = vpack.c.b16 %v1069, %v1059
        %v1320 = vpack.c.b16 %v1070, %v1060
        %v1321 = vpack.c.b16 %v1071, %v1061
        %v1322 = vpack.c.b16 %v1072, %v1062
        %v1323 = vpack.c.b16 %v1073, %v1063
        %v1324 = vpack.c.b16 %v1074, %v1064
        %v1325 = vpack.c.b16 %v1075, %v1065
        %v1326 = vpack.c.b16 %v1076, %v1066
        %v1327 = vpack.c.b16 %v1087, %v1077
        %v1328 = vpack.c.b16 %v1088, %v1078
        %v1329 = vpack.c.b16 %v1089, %v1079
        %v1330 = vpack.c.b16 %v1090, %v1080
        %v1331 = vpack.c.b16 %v1091, %v1081
        %v1332 = vpack.c.b16 %v1092, %v1082
        %v1333 = vpack.c.b16 %v1093, %v1083
        %v1334 = vpack.c.b16 %v1094, %v1084
        %v1335 = vpack.c.b16 %v1095, %v1085
        %v1336 = vpack.c.b16 %v1096, %v1086
        %v1337 = vpack.c.b16 %v1107, %v1097
        %v1338 = vpack.c.b16 %v1108, %v1098
        %v1339 = vpack.c.b16 %v1109, %v1099
        %v1340 = vpack.c.b16 %v1110, %v1100
        %v1341 = vpack.c.b16 %v1111, %v1101
        %v1342 = vpack.c.b16 %v1112, %v1102
        %v1343 = vpack.c.b16 %v1113, %v1103
        %v1344 = vpack.c.b16 %v1114, %v1104
        %v1345 = vpack.c.b16 %v1115, %v1105
        %v1346 = vpack.c.b16 %v1116, %v1106
        %v1347 = vpack.c.b16 %v1127, %v1117
        %v1348 = vpack.c.b16 %v1128, %v1118
        %v1349 = vpack.c.b16 %v1129, %v1119
        %v1350 = vpack.c.b16 %v1130, %v1120
        %v1351 = vpack.c.b16 %v1131, %v1121
        %v1352 = vpack.c.b16 %v1132, %v1122
        %v1353 = vpack.c.b16 %v1133, %v1123
        %v1354 = vpack.c.b16 %v1134, %v1124
        %v1355 = vpack.c.b16 %v1135, %v1125
        %v1356 = vpack.c.b16 %v1136, %v1126
        %v1357 = vpack.c.b16 %v1147, %v1137
        %v1358 = vpack.c.b16 %v1148, %v1138
        %v1359 = vpack.c.b16 %v1149, %v1139
        %v1360 = vpack.c.b16 %v1150, %v1140
        %v1361 = vpack.c.b16 %v1151, %v1141
        %v1362 = vpack.c.b16 %v1152, %v1142
        %v1363 = vpack.c.b16 %v1153, %v1143
        %v1364 = vpack.c.b16 %v1154, %v1144
        %v1365 = vpack.c.b16 %v1155, %v1145
        %v1366 = vpack.c.b16 %v1156, %v1146
        %v1367 = vpack.c.b16 %v1167, %v1157
        %v1368 = vpack.c.b16 %v1168, %v1158
        %v1369 = vpack.c.b16 %v1169, %v1159
        %v1370 = vpack.c.b16 %v1170, %v1160
        %v1371 = vpack.c.b16 %v1171, %v1161
        %v1372 = vpack.c.b16 %v1172, %v1162
        %v1373 = vpack.c.b16 %v1173, %v1163
        %v1374 = vpack.c.b16 %v1174, %v1164
        %v1375 = vpack.c.b16 %v1175, %v1165
        %v1376 = vpack.c.b16 %v1176, %v1166
        %v1377 = vpack.c.b16 %v1187, %v1177
        %v1378 = vpack.c.b16 %v1188, %v1178
        %v1379 = vpack.c.b16 %v1189, %v1179
        %v1380 = vpack.c.b16 %v1190, %v1180
        %v1381 = vpack.c.b16 %v1191, %v1181
        %v1382 = vpack.c.b16 %v1192, %v1182
        %v1383 = vpack.c.b16 %v1193, %v1183
        %v1384 = vpack.c.b16 %v1194, %v1184
        %v1385 = vpack.c.b16 %v1195, %v1185
        %v1386 = vpack.c.b16 %v1196, %v1186
        %v1387 = vpack.c.b16 %v1207, %v1197
        %v1388 = vpack.c.b16 %v1208, %v1198
        %v1389 = vpack.c.b16 %v1209, %v1199
        %v1390 = vpack.c.b16 %v1210, %v1200
        %v1391 = vpack.c.b16 %v1211, %v1201
        %v1392 = vpack.c.b16 %v1212, %v1202
        %v1393 = vpack.c.b16 %v1213, %v1203
        %v1394 = vpack.c.b16 %v1214, %v1204
        %v1395 = vpack.c.b16 %v1215, %v1205
        %v1396 = vpack.c.b16 %v1216, %v1206
        %v1397 = vpack.c.b16 %v1227, %v1217
        %v1398 = vpack.c.b16 %v1228, %v1218
        %v1399 = vpack.c.b16 %v1229, %v1219
        %v1400 = vpack.c.b16 %v1230, %v1220
        %v1401 = vpack.c.b16 %v1231, %v1221
        %v1402 = vpack.c.b16 %v1232, %v1222
        %v1403 = vpack.c.b16 %v1233, %v1223
        %v1404 = vpack.c.b16 %v1234, %v1224
        %v1405 = vpack.c.b16 %v1235, %v1225
        %v1406 = vpack.c.b16 %v1236, %v1226
        %v1407 = vpack.c.b16 %v1247, %v1237
        %v1408 = vpack.c.b16 %v1248, %v1238
        %v1409 = vpack.c.b16 %v1249, %v1239
        %v1410 = vpack.c.b16 %v1250, %v1240
        %v1411 = vpack.c.b16 %v1251, %v1241
        %v1412 = vpack.c.b16 %v1252, %v1242
        %v1413 = vpack.c.b16 %v1253, %v1243
        %v1414 = vpack.c.b16 %v1254, %v1244
        %v1415 = vpack.c.b16 %v1255, %v1245
        %v1416 = vpack.c.b16 %v1256, %v1246
        %1577 = vmatprep.subr.bf16.mxu0 %v1258
        %1578 = vmatpush1.bf16.msra.mxu0 %v1257
        %1579 = vmatprep.subr.bf16.mxu0 %v1268
        %1580 = vmatpush1.bf16.msra.mxu0 %v1267
        %1581 = vmatprep.subr.bf16.mxu0 %v1278
        %1582 = vmatpush1.bf16.msra.mxu0 %v1277
        %1583 = vmatprep.subr.bf16.mxu0 %v1288
        %1584 = vmatpush1.bf16.msra.mxu0 %v1287
        %1585 = vmatprep.subr.bf16.mxu0 %v1298
        %1586 = vmatpush1.bf16.msra.mxu0 %v1297
        %1587 = vmatprep.subr.bf16.mxu0 %v1308
        %1588 = vmatpush1.bf16.msra.mxu0 %v1307
        %1589 = vmatprep.subr.bf16.mxu0 %v1318
        %1590 = vmatpush1.bf16.msra.mxu0 %v1317
        %1591 = vmatprep.subr.bf16.mxu0 %v1328
        %1592 = vmatpush1.bf16.msra.mxu0 %v1327
        %1593 = vmatprep.subr.bf16.mxu0 %v1338
        %1594 = vmatpush1.bf16.msra.mxu0 %v1337
        %1595 = vmatprep.subr.bf16.mxu0 %v1348
        %1596 = vmatpush1.bf16.msra.mxu0 %v1347
        %1597 = vmatprep.subr.bf16.mxu0 %v1358
        %1598 = vmatpush1.bf16.msra.mxu0 %v1357
        %1599 = vmatprep.subr.bf16.mxu0 %v1368
        %1600 = vmatpush1.bf16.msra.mxu0 %v1367
        %1601 = vmatprep.subr.bf16.mxu0 %v1378
        %1602 = vmatpush1.bf16.msra.mxu0 %v1377
        %1603 = vmatprep.subr.bf16.mxu0 %v1388
        %1604 = vmatpush1.bf16.msra.mxu0 %v1387
        %1605 = vmatprep.subr.bf16.mxu0 %v1398
        %1606 = vmatpush1.bf16.msra.mxu0 %v1397
        %1607 = vmatprep.subr.bf16.mxu0 %v1408
        %1608 = vmatpush1.bf16.msra.mxu0 %v1407
        %1609 = vmatprep.mubr.bf16.mxu0 %v602
        %1610 = vmatmul.mubr.bf16.gmra.mrb[0].mxu0 %v601
        %v1611 = vpop.f32.mrb[0].mxu0
        %v1612 = vadd.f32 0.0, %v1611
        %v1613 = vpop.f32.mrb[0].mxu0
        %v1614 = vadd.f32 0.0, %v1613
        %v1615 = vpop.f32.mrb[0].mxu0
        %v1616 = vadd.f32 0.0, %v1615
        %v1617 = vpop.f32.mrb[0].mxu0
        %v1618 = vadd.f32 0.0, %v1617
        %1619 = vmatprep.mubr.bf16.mxu0 %v604
        %1620 = vmatmul.mubr.bf16.gmra.mrb[0].mxu0 %v603
        %v1621 = vpop.f32.mrb[0].mxu0
        %v1622 = vadd.f32 0.0, %v1621
        %v1623 = vpop.f32.mrb[0].mxu0
        %v1624 = vadd.f32 0.0, %v1623
        %v1625 = vpop.f32.mrb[0].mxu0
        %v1626 = vadd.f32 0.0, %v1625
        %v1627 = vpop.f32.mrb[0].mxu0
        %v1628 = vadd.f32 0.0, %v1627
        %1629 = vmatprep.mubr.bf16.mxu0 %v606
        %1630 = vmatmul.mubr.bf16.gmra.mrb[0].mxu0 %v605
        %v1631 = vpop.f32.mrb[0].mxu0
        %v1632 = vadd.f32 0.0, %v1631
        %v1633 = vpop.f32.mrb[0].mxu0
        %v1634 = vadd.f32 0.0, %v1633
        %v1635 = vpop.f32.mrb[0].mxu0
        %v1636 = vadd.f32 0.0, %v1635
        %v1637 = vpop.f32.mrb[0].mxu0
        %v1638 = vadd.f32 0.0, %v1637
        %1639 = vmatprep.mubr.bf16.mxu0 %v608
        %1640 = vmatmul.mubr.bf16.gmra.mrb[0].mxu0 %v607
        %v1641 = vpop.f32.mrb[0].mxu0
        %v1642 = vadd.f32 0.0, %v1641
        %v1643 = vpop.f32.mrb[0].mxu0
        %v1644 = vadd.f32 0.0, %v1643
        %v1645 = vpop.f32.mrb[0].mxu0
        %v1646 = vadd.f32 0.0, %v1645
        %v1647 = vpop.f32.mrb[0].mxu0
        %v1648 = vadd.f32 0.0, %v1647
        %1649 = vmatprep.mubr.bf16.mxu0 %v610
        %1650 = vmatmul.mubr.bf16.gmra.mrb[0].mxu0 %v609
        %v1651 = vpop.f32.mrb[0].mxu0
        %v1652 = vadd.f32 0.0, %v1651
        %v1653 = vpop.f32.mrb[0].mxu0
        %v1654 = vadd.f32 0.0, %v1653
        %v1655 = vpop.f32.mrb[0].mxu0
        %v1656 = vadd.f32 0.0, %v1655
        %v1657 = vpop.f32.mrb[0].mxu0
        %v1658 = vadd.f32 0.0, %v1657
        %1659 = vmatprep.mubr.bf16.mxu0 %v612
        %1660 = vmatmul.mubr.bf16.gmra.mrb[0].mxu0 %v611
        %v1661 = vpop.f32.mrb[0].mxu0
        %v1662 = vadd.f32 0.0, %v1661
        %v1663 = vpop.f32.mrb[0].mxu0
        %v1664 = vadd.f32 0.0, %v1663
        %v1665 = vpop.f32.mrb[0].mxu0
        %v1666 = vadd.f32 0.0, %v1665
        %v1667 = vpop.f32.mrb[0].mxu0
        %v1668 = vadd.f32 0.0, %v1667
        %1669 = vmatprep.mubr.bf16.mxu0 %v614
        %1670 = vmatmul.mubr.bf16.gmra.mrb[0].mxu0 %v613
        %v1671 = vpop.f32.mrb[0].mxu0
        %v1672 = vadd.f32 0.0, %v1671
        %v1673 = vpop.f32.mrb[0].mxu0
        %v1674 = vadd.f32 0.0, %v1673
        %v1675 = vpop.f32.mrb[0].mxu0
        %v1676 = vadd.f32 0.0, %v1675
        %v1677 = vpop.f32.mrb[0].mxu0
        %v1678 = vadd.f32 0.0, %v1677
        %1679 = vmatprep.mubr.bf16.mxu0 %v616
        %1680 = vmatmul.mubr.bf16.gmra.mrb[0].mxu0 %v615
        %v1681 = vpop.f32.mrb[0].mxu0
        %v1682 = vadd.f32 0.0, %v1681
        %v1683 = vpop.f32.mrb[0].mxu0
        %v1684 = vadd.f32 0.0, %v1683
        %v1685 = vpop.f32.mrb[0].mxu0
        %v1686 = vadd.f32 0.0, %v1685
        %v1687 = vpop.f32.mrb[0].mxu0
        %v1688 = vadd.f32 0.0, %v1687
        %1689 = vdwg.mxu0
        %1690 = vmatprep.subr.bf16.mxu0 %v1260
        %1691 = vmatpush1.bf16.msra.mxu0 %v1259
        %1692 = vmatprep.subr.bf16.mxu0 %v1270
        %1693 = vmatpush1.bf16.msra.mxu0 %v1269
        %1694 = vmatprep.subr.bf16.mxu0 %v1280
        %1695 = vmatpush1.bf16.msra.mxu0 %v1279
        %1696 = vmatprep.subr.bf16.mxu0 %v1290
        %1697 = vmatpush1.bf16.msra.mxu0 %v1289
        %1698 = vmatprep.subr.bf16.mxu0 %v1300
        %1699 = vmatpush1.bf16.msra.mxu0 %v1299
        %1700 = vmatprep.subr.bf16.mxu0 %v1310
        %1701 = vmatpush1.bf16.msra.mxu0 %v1309
        %1702 = vmatprep.subr.bf16.mxu0 %v1320
        %1703 = vmatpush1.bf16.msra.mxu0 %v1319
        %1704 = vmatprep.subr.bf16.mxu0 %v1330
        %1705 = vmatpush1.bf16.msra.mxu0 %v1329
        %1706 = vmatprep.subr.bf16.mxu0 %v1340
        %1707 = vmatpush1.bf16.msra.mxu0 %v1339
        %1708 = vmatprep.subr.bf16.mxu0 %v1350
        %1709 = vmatpush1.bf16.msra.mxu0 %v1349
        %1710 = vmatprep.subr.bf16.mxu0 %v1360
        %1711 = vmatpush1.bf16.msra.mxu0 %v1359
        %1712 = vmatprep.subr.bf16.mxu0 %v1370
        %1713 = vmatpush1.bf16.msra.mxu0 %v1369
        %1714 = vmatprep.subr.bf16.mxu0 %v1380
        %1715 = vmatpush1.bf16.msra.mxu0 %v1379
        %1716 = vmatprep.subr.bf16.mxu0 %v1390
        %1717 = vmatpush1.bf16.msra.mxu0 %v1389
        %1718 = vmatprep.subr.bf16.mxu0 %v1400
        %1719 = vmatpush1.bf16.msra.mxu0 %v1399
        %1720 = vmatprep.subr.bf16.mxu0 %v1410
        %1721 = vmatpush1.bf16.msra.mxu0 %v1409
        %1722 = vmatprep.mubr.bf16.mxu0 %v602
        %1723 = vmatmul.mubr.bf16.gmra.mrb[0].mxu0 %v601
        %v1724 = vpop.f32.mrb[0].mxu0
        %v1725 = vadd.f32 0.0, %v1724
        %v1726 = vpop.f32.mrb[0].mxu0
        %v1727 = vadd.f32 0.0, %v1726
        %v1728 = vpop.f32.mrb[0].mxu0
        %v1729 = vadd.f32 0.0, %v1728
        %v1730 = vpop.f32.mrb[0].mxu0
        %v1731 = vadd.f32 0.0, %v1730
        %1732 = vmatprep.mubr.bf16.mxu0 %v604
        %1733 = vmatmul.mubr.bf16.gmra.mrb[0].mxu0 %v603
        %v1734 = vpop.f32.mrb[0].mxu0
        %v1735 = vadd.f32 0.0, %v1734
        %v1736 = vpop.f32.mrb[0].mxu0
        %v1737 = vadd.f32 0.0, %v1736
        %v1738 = vpop.f32.mrb[0].mxu0
        %v1739 = vadd.f32 0.0, %v1738
        %v1740 = vpop.f32.mrb[0].mxu0
        %v1741 = vadd.f32 0.0, %v1740
        %1742 = vmatprep.mubr.bf16.mxu0 %v606
        %1743 = vmatmul.mubr.bf16.gmra.mrb[0].mxu0 %v605
        %v1744 = vpop.f32.mrb[0].mxu0
        %v1745 = vadd.f32 0.0, %v1744
        %v1746 = vpop.f32.mrb[0].mxu0
        %v1747 = vadd.f32 0.0, %v1746
        %v1748 = vpop.f32.mrb[0].mxu0
        %v1749 = vadd.f32 0.0, %v1748
        %v1750 = vpop.f32.mrb[0].mxu0
        %v1751 = vadd.f32 0.0, %v1750
        %1752 = vmatprep.mubr.bf16.mxu0 %v608
        %1753 = vmatmul.mubr.bf16.gmra.mrb[0].mxu0 %v607
        %v1754 = vpop.f32.mrb[0].mxu0
        %v1755 = vadd.f32 0.0, %v1754
        %v1756 = vpop.f32.mrb[0].mxu0
        %v1757 = vadd.f32 0.0, %v1756
        %v1758 = vpop.f32.mrb[0].mxu0
        %v1759 = vadd.f32 0.0, %v1758
        %v1760 = vpop.f32.mrb[0].mxu0
        %v1761 = vadd.f32 0.0, %v1760
        %1762 = vmatprep.mubr.bf16.mxu0 %v610
        %1763 = vmatmul.mubr.bf16.gmra.mrb[0].mxu0 %v609
        %v1764 = vpop.f32.mrb[0].mxu0
        %v1765 = vadd.f32 0.0, %v1764
        %v1766 = vpop.f32.mrb[0].mxu0
        %v1767 = vadd.f32 0.0, %v1766
        %v1768 = vpop.f32.mrb[0].mxu0
        %v1769 = vadd.f32 0.0, %v1768
        %v1770 = vpop.f32.mrb[0].mxu0
        %v1771 = vadd.f32 0.0, %v1770
        %1772 = vmatprep.mubr.bf16.mxu0 %v612
        %1773 = vmatmul.mubr.bf16.gmra.mrb[0].mxu0 %v611
        %v1774 = vpop.f32.mrb[0].mxu0
        %v1775 = vadd.f32 0.0, %v1774
        %v1776 = vpop.f32.mrb[0].mxu0
        %v1777 = vadd.f32 0.0, %v1776
        %v1778 = vpop.f32.mrb[0].mxu0
        %v1779 = vadd.f32 0.0, %v1778
        %v1780 = vpop.f32.mrb[0].mxu0
        %v1781 = vadd.f32 0.0, %v1780
        %1782 = vmatprep.mubr.bf16.mxu0 %v614
        %1783 = vmatmul.mubr.bf16.gmra.mrb[0].mxu0 %v613
        %v1784 = vpop.f32.mrb[0].mxu0
        %v1785 = vadd.f32 0.0, %v1784
        %v1786 = vpop.f32.mrb[0].mxu0
        %v1787 = vadd.f32 0.0, %v1786
        %v1788 = vpop.f32.mrb[0].mxu0
        %v1789 = vadd.f32 0.0, %v1788
        %v1790 = vpop.f32.mrb[0].mxu0
        %v1791 = vadd.f32 0.0, %v1790
        %1792 = vmatprep.mubr.bf16.mxu0 %v616
        %1793 = vmatmul.mubr.bf16.gmra.mrb[0].mxu0 %v615
        %v1794 = vpop.f32.mrb[0].mxu0
        %v1795 = vadd.f32 0.0, %v1794
        %v1796 = vpop.f32.mrb[0].mxu0
        %v1797 = vadd.f32 0.0, %v1796
        %v1798 = vpop.f32.mrb[0].mxu0
        %v1799 = vadd.f32 0.0, %v1798
        %v1800 = vpop.f32.mrb[0].mxu0
        %v1801 = vadd.f32 0.0, %v1800
        %1802 = vdwg.mxu0
        %1803 = vmatprep.subr.bf16.mxu0 %v1262
        %1804 = vmatpush1.bf16.msra.mxu0 %v1261
        %1805 = vmatprep.subr.bf16.mxu0 %v1272
        %1806 = vmatpush1.bf16.msra.mxu0 %v1271
        %1807 = vmatprep.subr.bf16.mxu0 %v1282
        %1808 = vmatpush1.bf16.msra.mxu0 %v1281
        %1809 = vmatprep.subr.bf16.mxu0 %v1292
        %1810 = vmatpush1.bf16.msra.mxu0 %v1291
        %1811 = vmatprep.subr.bf16.mxu0 %v1302
        %1812 = vmatpush1.bf16.msra.mxu0 %v1301
        %1813 = vmatprep.subr.bf16.mxu0 %v1312
        %1814 = vmatpush1.bf16.msra.mxu0 %v1311
        %1815 = vmatprep.subr.bf16.mxu0 %v1322
        %1816 = vmatpush1.bf16.msra.mxu0 %v1321
        %1817 = vmatprep.subr.bf16.mxu0 %v1332
        %1818 = vmatpush1.bf16.msra.mxu0 %v1331
        %1819 = vmatprep.subr.bf16.mxu0 %v1342
        %1820 = vmatpush1.bf16.msra.mxu0 %v1341
        %1821 = vmatprep.subr.bf16.mxu0 %v1352
        %1822 = vmatpush1.bf16.msra.mxu0 %v1351
        %1823 = vmatprep.subr.bf16.mxu0 %v1362
        %1824 = vmatpush1.bf16.msra.mxu0 %v1361
        %1825 = vmatprep.subr.bf16.mxu0 %v1372
        %1826 = vmatpush1.bf16.msra.mxu0 %v1371
        %1827 = vmatprep.subr.bf16.mxu0 %v1382
        %1828 = vmatpush1.bf16.msra.mxu0 %v1381
        %1829 = vmatprep.subr.bf16.mxu0 %v1392
        %1830 = vmatpush1.bf16.msra.mxu0 %v1391
        %1831 = vmatprep.subr.bf16.mxu0 %v1402
        %1832 = vmatpush1.bf16.msra.mxu0 %v1401
        %1833 = vmatprep.subr.bf16.mxu0 %v1412
        %1834 = vmatpush1.bf16.msra.mxu0 %v1411
        %1835 = vmatprep.mubr.bf16.mxu0 %v602
        %1836 = vmatmul.mubr.bf16.gmra.mrb[0].mxu0 %v601
        %v1837 = vpop.f32.mrb[0].mxu0
        %v1838 = vadd.f32 0.0, %v1837
        %v1839 = vpop.f32.mrb[0].mxu0
        %v1840 = vadd.f32 0.0, %v1839
        %v1841 = vpop.f32.mrb[0].mxu0
        %v1842 = vadd.f32 0.0, %v1841
        %v1843 = vpop.f32.mrb[0].mxu0
        %v1844 = vadd.f32 0.0, %v1843
        %1845 = vmatprep.mubr.bf16.mxu0 %v604
        %1846 = vmatmul.mubr.bf16.gmra.mrb[0].mxu0 %v603
        %v1847 = vpop.f32.mrb[0].mxu0
        %v1848 = vadd.f32 0.0, %v1847
        %v1849 = vpop.f32.mrb[0].mxu0
        %v1850 = vadd.f32 0.0, %v1849
        %v1851 = vpop.f32.mrb[0].mxu0
        %v1852 = vadd.f32 0.0, %v1851
        %v1853 = vpop.f32.mrb[0].mxu0
        %v1854 = vadd.f32 0.0, %v1853
        %1855 = vmatprep.mubr.bf16.mxu0 %v606
        %1856 = vmatmul.mubr.bf16.gmra.mrb[0].mxu0 %v605
        %v1857 = vpop.f32.mrb[0].mxu0
        %v1858 = vadd.f32 0.0, %v1857
        %v1859 = vpop.f32.mrb[0].mxu0
        %v1860 = vadd.f32 0.0, %v1859
        %v1861 = vpop.f32.mrb[0].mxu0
        %v1862 = vadd.f32 0.0, %v1861
        %v1863 = vpop.f32.mrb[0].mxu0
        %v1864 = vadd.f32 0.0, %v1863
        %1865 = vmatprep.mubr.bf16.mxu0 %v608
        %1866 = vmatmul.mubr.bf16.gmra.mrb[0].mxu0 %v607
        %v1867 = vpop.f32.mrb[0].mxu0
        %v1868 = vadd.f32 0.0, %v1867
        %v1869 = vpop.f32.mrb[0].mxu0
        %v1870 = vadd.f32 0.0, %v1869
        %v1871 = vpop.f32.mrb[0].mxu0
        %v1872 = vadd.f32 0.0, %v1871
        %v1873 = vpop.f32.mrb[0].mxu0
        %v1874 = vadd.f32 0.0, %v1873
        %1875 = vmatprep.mubr.bf16.mxu0 %v610
        %1876 = vmatmul.mubr.bf16.gmra.mrb[0].mxu0 %v609
        %v1877 = vpop.f32.mrb[0].mxu0
        %v1878 = vadd.f32 0.0, %v1877
        %v1879 = vpop.f32.mrb[0].mxu0
        %v1880 = vadd.f32 0.0, %v1879
        %v1881 = vpop.f32.mrb[0].mxu0
        %v1882 = vadd.f32 0.0, %v1881
        %v1883 = vpop.f32.mrb[0].mxu0
        %v1884 = vadd.f32 0.0, %v1883
        %1885 = vmatprep.mubr.bf16.mxu0 %v612
        %1886 = vmatmul.mubr.bf16.gmra.mrb[0].mxu0 %v611
        %v1887 = vpop.f32.mrb[0].mxu0
        %v1888 = vadd.f32 0.0, %v1887
        %v1889 = vpop.f32.mrb[0].mxu0
        %v1890 = vadd.f32 0.0, %v1889
        %v1891 = vpop.f32.mrb[0].mxu0
        %v1892 = vadd.f32 0.0, %v1891
        %v1893 = vpop.f32.mrb[0].mxu0
        %v1894 = vadd.f32 0.0, %v1893
        %1895 = vmatprep.mubr.bf16.mxu0 %v614
        %1896 = vmatmul.mubr.bf16.gmra.mrb[0].mxu0 %v613
        %v1897 = vpop.f32.mrb[0].mxu0
        %v1898 = vadd.f32 0.0, %v1897
        %v1899 = vpop.f32.mrb[0].mxu0
        %v1900 = vadd.f32 0.0, %v1899
        %v1901 = vpop.f32.mrb[0].mxu0
        %v1902 = vadd.f32 0.0, %v1901
        %v1903 = vpop.f32.mrb[0].mxu0
        %v1904 = vadd.f32 0.0, %v1903
        %1905 = vmatprep.mubr.bf16.mxu0 %v616
        %1906 = vmatmul.mubr.bf16.gmra.mrb[0].mxu0 %v615
        %v1907 = vpop.f32.mrb[0].mxu0
        %v1908 = vadd.f32 0.0, %v1907
        %v1909 = vpop.f32.mrb[0].mxu0
        %v1910 = vadd.f32 0.0, %v1909
        %v1911 = vpop.f32.mrb[0].mxu0
        %v1912 = vadd.f32 0.0, %v1911
        %v1913 = vpop.f32.mrb[0].mxu0
        %v1914 = vadd.f32 0.0, %v1913
        %1915 = vdwg.mxu0
        %1916 = vmatprep.subr.bf16.mxu0 %v1264
        %1917 = vmatpush1.bf16.msra.mxu0 %v1263
        %1918 = vmatprep.subr.bf16.mxu0 %v1274
        %1919 = vmatpush1.bf16.msra.mxu0 %v1273
        %1920 = vmatprep.subr.bf16.mxu0 %v1284
        %1921 = vmatpush1.bf16.msra.mxu0 %v1283
        %1922 = vmatprep.subr.bf16.mxu0 %v1294
        %1923 = vmatpush1.bf16.msra.mxu0 %v1293
        %1924 = vmatprep.subr.bf16.mxu0 %v1304
        %1925 = vmatpush1.bf16.msra.mxu0 %v1303
        %1926 = vmatprep.subr.bf16.mxu0 %v1314
        %1927 = vmatpush1.bf16.msra.mxu0 %v1313
        %1928 = vmatprep.subr.bf16.mxu0 %v1324
        %1929 = vmatpush1.bf16.msra.mxu0 %v1323
        %1930 = vmatprep.subr.bf16.mxu0 %v1334
        %1931 = vmatpush1.bf16.msra.mxu0 %v1333
        %1932 = vmatprep.subr.bf16.mxu0 %v1344
        %1933 = vmatpush1.bf16.msra.mxu0 %v1343
        %1934 = vmatprep.subr.bf16.mxu0 %v1354
        %1935 = vmatpush1.bf16.msra.mxu0 %v1353
        %1936 = vmatprep.subr.bf16.mxu0 %v1364
        %1937 = vmatpush1.bf16.msra.mxu0 %v1363
        %1938 = vmatprep.subr.bf16.mxu0 %v1374
        %1939 = vmatpush1.bf16.msra.mxu0 %v1373
        %1940 = vmatprep.subr.bf16.mxu0 %v1384
        %1941 = vmatpush1.bf16.msra.mxu0 %v1383
        %1942 = vmatprep.subr.bf16.mxu0 %v1394
        %1943 = vmatpush1.bf16.msra.mxu0 %v1393
        %1944 = vmatprep.subr.bf16.mxu0 %v1404
        %1945 = vmatpush1.bf16.msra.mxu0 %v1403
        %1946 = vmatprep.subr.bf16.mxu0 %v1414
        %1947 = vmatpush1.bf16.msra.mxu0 %v1413
        %1948 = vmatprep.mubr.bf16.mxu0 %v602
        %1949 = vmatmul.mubr.bf16.gmra.mrb[0].mxu0 %v601
        %v1950 = vpop.f32.mrb[0].mxu0
        %v1951 = vadd.f32 0.0, %v1950
        %v1952 = vpop.f32.mrb[0].mxu0
        %v1953 = vadd.f32 0.0, %v1952
        %v1954 = vpop.f32.mrb[0].mxu0
        %v1955 = vadd.f32 0.0, %v1954
        %v1956 = vpop.f32.mrb[0].mxu0
        %v1957 = vadd.f32 0.0, %v1956
        %1958 = vmatprep.mubr.bf16.mxu0 %v604
        %1959 = vmatmul.mubr.bf16.gmra.mrb[0].mxu0 %v603
        %v1960 = vpop.f32.mrb[0].mxu0
        %v1961 = vadd.f32 0.0, %v1960
        %v1962 = vpop.f32.mrb[0].mxu0
        %v1963 = vadd.f32 0.0, %v1962
        %v1964 = vpop.f32.mrb[0].mxu0
        %v1965 = vadd.f32 0.0, %v1964
        %v1966 = vpop.f32.mrb[0].mxu0
        %v1967 = vadd.f32 0.0, %v1966
        %1968 = vmatprep.mubr.bf16.mxu0 %v606
        %1969 = vmatmul.mubr.bf16.gmra.mrb[0].mxu0 %v605
        %v1970 = vpop.f32.mrb[0].mxu0
        %v1971 = vadd.f32 0.0, %v1970
        %v1972 = vpop.f32.mrb[0].mxu0
        %v1973 = vadd.f32 0.0, %v1972
        %v1974 = vpop.f32.mrb[0].mxu0
        %v1975 = vadd.f32 0.0, %v1974
        %v1976 = vpop.f32.mrb[0].mxu0
        %v1977 = vadd.f32 0.0, %v1976
        %1978 = vmatprep.mubr.bf16.mxu0 %v608
        %1979 = vmatmul.mubr.bf16.gmra.mrb[0].mxu0 %v607
        %v1980 = vpop.f32.mrb[0].mxu0
        %v1981 = vadd.f32 0.0, %v1980
        %v1982 = vpop.f32.mrb[0].mxu0
        %v1983 = vadd.f32 0.0, %v1982
        %v1984 = vpop.f32.mrb[0].mxu0
        %v1985 = vadd.f32 0.0, %v1984
        %v1986 = vpop.f32.mrb[0].mxu0
        %v1987 = vadd.f32 0.0, %v1986
        %1988 = vmatprep.mubr.bf16.mxu0 %v610
        %1989 = vmatmul.mubr.bf16.gmra.mrb[0].mxu0 %v609
        %v1990 = vpop.f32.mrb[0].mxu0
        %v1991 = vadd.f32 0.0, %v1990
        %v1992 = vpop.f32.mrb[0].mxu0
        %v1993 = vadd.f32 0.0, %v1992
        %v1994 = vpop.f32.mrb[0].mxu0
        %v1995 = vadd.f32 0.0, %v1994
        %v1996 = vpop.f32.mrb[0].mxu0
        %v1997 = vadd.f32 0.0, %v1996
        %1998 = vmatprep.mubr.bf16.mxu0 %v612
        %1999 = vmatmul.mubr.bf16.gmra.mrb[0].mxu0 %v611
        %v2000 = vpop.f32.mrb[0].mxu0
        %v2001 = vadd.f32 0.0, %v2000
        %v2002 = vpop.f32.mrb[0].mxu0
        %v2003 = vadd.f32 0.0, %v2002
        %v2004 = vpop.f32.mrb[0].mxu0
        %v2005 = vadd.f32 0.0, %v2004
        %v2006 = vpop.f32.mrb[0].mxu0
        %v2007 = vadd.f32 0.0, %v2006
        %2008 = vmatprep.mubr.bf16.mxu0 %v614
        %2009 = vmatmul.mubr.bf16.gmra.mrb[0].mxu0 %v613
        %v2010 = vpop.f32.mrb[0].mxu0
        %v2011 = vadd.f32 0.0, %v2010
        %v2012 = vpop.f32.mrb[0].mxu0
        %v2013 = vadd.f32 0.0, %v2012
        %v2014 = vpop.f32.mrb[0].mxu0
        %v2015 = vadd.f32 0.0, %v2014
        %v2016 = vpop.f32.mrb[0].mxu0
        %v2017 = vadd.f32 0.0, %v2016
        %2018 = vmatprep.mubr.bf16.mxu0 %v616
        %2019 = vmatmul.mubr.bf16.gmra.mrb[0].mxu0 %v615
        %v2020 = vpop.f32.mrb[0].mxu0
        %v2021 = vadd.f32 0.0, %v2020
        %v2022 = vpop.f32.mrb[0].mxu0
        %v2023 = vadd.f32 0.0, %v2022
        %v2024 = vpop.f32.mrb[0].mxu0
        %v2025 = vadd.f32 0.0, %v2024
        %v2026 = vpop.f32.mrb[0].mxu0
        %v2027 = vadd.f32 0.0, %v2026
        %2028 = vdwg.mxu0
        %2029 = vmatprep.subr.bf16.mxu0 %v1266
        %2030 = vmatpush1.bf16.msra.mxu0 %v1265
        %2031 = vmatprep.subr.bf16.mxu0 %v1276
        %2032 = vmatpush1.bf16.msra.mxu0 %v1275
        %2033 = vmatprep.subr.bf16.mxu0 %v1286
        %2034 = vmatpush1.bf16.msra.mxu0 %v1285
        %2035 = vmatprep.subr.bf16.mxu0 %v1296
        %2036 = vmatpush1.bf16.msra.mxu0 %v1295
        %2037 = vmatprep.subr.bf16.mxu0 %v1306
        %2038 = vmatpush1.bf16.msra.mxu0 %v1305
        %2039 = vmatprep.subr.bf16.mxu0 %v1316
        %2040 = vmatpush1.bf16.msra.mxu0 %v1315
        %2041 = vmatprep.subr.bf16.mxu0 %v1326
        %2042 = vmatpush1.bf16.msra.mxu0 %v1325
        %2043 = vmatprep.subr.bf16.mxu0 %v1336
        %2044 = vmatpush1.bf16.msra.mxu0 %v1335
        %2045 = vmatprep.subr.bf16.mxu0 %v1346
        %2046 = vmatpush1.bf16.msra.mxu0 %v1345
        %2047 = vmatprep.subr.bf16.mxu0 %v1356
        %2048 = vmatpush1.bf16.msra.mxu0 %v1355
        %2049 = vmatprep.subr.bf16.mxu0 %v1366
        %2050 = vmatpush1.bf16.msra.mxu0 %v1365
        %2051 = vmatprep.subr.bf16.mxu0 %v1376
        %2052 = vmatpush1.bf16.msra.mxu0 %v1375
        %2053 = vmatprep.subr.bf16.mxu0 %v1386
        %2054 = vmatpush1.bf16.msra.mxu0 %v1385
        %2055 = vmatprep.subr.bf16.mxu0 %v1396
        %2056 = vmatpush1.bf16.msra.mxu0 %v1395
        %2057 = vmatprep.subr.bf16.mxu0 %v1406
        %2058 = vmatpush1.bf16.msra.mxu0 %v1405
        %2059 = vmatprep.subr.bf16.mxu0 %v1416
        %2060 = vmatpush1.bf16.msra.mxu0 %v1415
        %2061 = vmatprep.mubr.bf16.mxu0 %v602
        %2062 = vmatmul.mubr.bf16.gmra.mrb[0].mxu0 %v601
        %v2063 = vpop.f32.mrb[0].mxu0
        %v2064 = vadd.f32 0.0, %v2063
        %v2065 = vpop.f32.mrb[0].mxu0
        %v2066 = vadd.f32 0.0, %v2065
        %v2067 = vpop.f32.mrb[0].mxu0
        %v2068 = vadd.f32 0.0, %v2067
        %v2069 = vpop.f32.mrb[0].mxu0
        %v2070 = vadd.f32 0.0, %v2069
        %2071 = vmatprep.mubr.bf16.mxu0 %v604
        %2072 = vmatmul.mubr.bf16.gmra.mrb[0].mxu0 %v603
        %v2073 = vpop.f32.mrb[0].mxu0
        %v2074 = vadd.f32 0.0, %v2073
        %v2075 = vpop.f32.mrb[0].mxu0
        %v2076 = vadd.f32 0.0, %v2075
        %v2077 = vpop.f32.mrb[0].mxu0
        %v2078 = vadd.f32 0.0, %v2077
        %v2079 = vpop.f32.mrb[0].mxu0
        %v2080 = vadd.f32 0.0, %v2079
        %2081 = vmatprep.mubr.bf16.mxu0 %v606
        %2082 = vmatmul.mubr.bf16.gmra.mrb[0].mxu0 %v605
        %v2083 = vpop.f32.mrb[0].mxu0
        %v2084 = vadd.f32 0.0, %v2083
        %v2085 = vpop.f32.mrb[0].mxu0
        %v2086 = vadd.f32 0.0, %v2085
        %v2087 = vpop.f32.mrb[0].mxu0
        %v2088 = vadd.f32 0.0, %v2087
        %v2089 = vpop.f32.mrb[0].mxu0
        %v2090 = vadd.f32 0.0, %v2089
        %2091 = vmatprep.mubr.bf16.mxu0 %v608
        %2092 = vmatmul.mubr.bf16.gmra.mrb[0].mxu0 %v607
        %v2093 = vpop.f32.mrb[0].mxu0
        %v2094 = vadd.f32 0.0, %v2093
        %v2095 = vpop.f32.mrb[0].mxu0
        %v2096 = vadd.f32 0.0, %v2095
        %v2097 = vpop.f32.mrb[0].mxu0
        %v2098 = vadd.f32 0.0, %v2097
        %v2099 = vpop.f32.mrb[0].mxu0
        %v2100 = vadd.f32 0.0, %v2099
        %2101 = vmatprep.mubr.bf16.mxu0 %v610
        %2102 = vmatmul.mubr.bf16.gmra.mrb[0].mxu0 %v609
        %v2103 = vpop.f32.mrb[0].mxu0
        %v2104 = vadd.f32 0.0, %v2103
        %v2105 = vpop.f32.mrb[0].mxu0
        %v2106 = vadd.f32 0.0, %v2105
        %v2107 = vpop.f32.mrb[0].mxu0
        %v2108 = vadd.f32 0.0, %v2107
        %v2109 = vpop.f32.mrb[0].mxu0
        %v2110 = vadd.f32 0.0, %v2109
        %2111 = vmatprep.mubr.bf16.mxu0 %v612
        %2112 = vmatmul.mubr.bf16.gmra.mrb[0].mxu0 %v611
        %v2113 = vpop.f32.mrb[0].mxu0
        %v2114 = vadd.f32 0.0, %v2113
        %v2115 = vpop.f32.mrb[0].mxu0
        %v2116 = vadd.f32 0.0, %v2115
        %v2117 = vpop.f32.mrb[0].mxu0
        %v2118 = vadd.f32 0.0, %v2117
        %v2119 = vpop.f32.mrb[0].mxu0
        %v2120 = vadd.f32 0.0, %v2119
        %2121 = vmatprep.mubr.bf16.mxu0 %v614
        %2122 = vmatmul.mubr.bf16.gmra.mrb[0].mxu0 %v613
        %v2123 = vpop.f32.mrb[0].mxu0
        %v2124 = vadd.f32 0.0, %v2123
        %v2125 = vpop.f32.mrb[0].mxu0
        %v2126 = vadd.f32 0.0, %v2125
        %v2127 = vpop.f32.mrb[0].mxu0
        %v2128 = vadd.f32 0.0, %v2127
        %v2129 = vpop.f32.mrb[0].mxu0
        %v2130 = vadd.f32 0.0, %v2129
        %2131 = vmatprep.mubr.bf16.mxu0 %v616
        %2132 = vmatmul.mubr.bf16.gmra.mrb[0].mxu0 %v615
        %v2133 = vpop.f32.mrb[0].mxu0
        %v2134 = vadd.f32 0.0, %v2133
        %v2135 = vpop.f32.mrb[0].mxu0
        %v2136 = vadd.f32 0.0, %v2135
        %v2137 = vpop.f32.mrb[0].mxu0
        %v2138 = vadd.f32 0.0, %v2137
        %v2139 = vpop.f32.mrb[0].mxu0
        %v2140 = vadd.f32 0.0, %v2139
        %2141 = vdwg.mxu0
        %v2142 = vld [vmem:[%s344] sm:$0xff]
        %v2143 = vld [vmem:[%s344 + $0x8] sm:$0xff]
        %v2144 = vld [vmem:[%s344 + $0x10] sm:$0xff]
        %v2145 = vld [vmem:[%s344 + $0x18] sm:$0xff]
        %v2146 = vld [vmem:[%s344 + $0x20] sm:$0xff]
        %v2147 = vld [vmem:[%s344 + $0x28] sm:$0xff]
        %v2148 = vld [vmem:[%s344 + $0x30] sm:$0xff]
        %v2149 = vld [vmem:[%s344 + $0x38] sm:$0xff]
        %v2150 = vld [vmem:[%s344 + $0x40] sm:$0xff]
        %v2151 = vld [vmem:[%s344 + $0x48] sm:$0xff]
        %v2152 = vld [vmem:[%s344 + $0x50] sm:$0xff]
        %v2153 = vld [vmem:[%s344 + $0x58] sm:$0xff]
        %v2154 = vld [vmem:[%s344 + $0x60] sm:$0xff]
        %v2155 = vld [vmem:[%s344 + $0x68] sm:$0xff]
        %v2156 = vld [vmem:[%s344 + $0x70] sm:$0xff]
        %v2157 = vld [vmem:[%s344 + $0x78] sm:$0xff]
        %v2158 = vld [vmem:[%s344 + $0x80] sm:$0xff]
        %v2159 = vld [vmem:[%s344 + $0x88] sm:$0xff]
        %v2160 = vld [vmem:[%s344 + $0x90] sm:$0xff]
        %v2161 = vld [vmem:[%s344 + $0x98] sm:$0xff]
        %v2162 = vld [vmem:[%s344 + $0xa0] sm:$0xff]
        %v2163 = vld [vmem:[%s344 + $0xa8] sm:$0xff]
        %v2164 = vld [vmem:[%s344 + $0xb0] sm:$0xff]
        %v2165 = vld [vmem:[%s344 + $0xb8] sm:$0xff]
        %v2166 = vld [vmem:[%s344 + $0xc0] sm:$0xff]
        %v2167 = vld [vmem:[%s344 + $0xc8] sm:$0xff]
        %v2168 = vld [vmem:[%s344 + $0xd0] sm:$0xff]
        %v2169 = vld [vmem:[%s344 + $0xd8] sm:$0xff]
        %v2170 = vld [vmem:[%s344 + $0xe0] sm:$0xff]
        %v2171 = vld [vmem:[%s344 + $0xe8] sm:$0xff]
        %v2172 = vld [vmem:[%s344 + $0xf0] sm:$0xff]
        %v2173 = vld [vmem:[%s344 + $0xf8] sm:$0xff]
        %v2174 = vld [vmem:[%s353] sm:$0xff]
        %v2175 = vld [vmem:[%s353 + $0x8] sm:$0xff]
        %v2176 = vld [vmem:[%s353 + $0x10] sm:$0xff]
        %v2177 = vld [vmem:[%s353 + $0x18] sm:$0xff]
        %v2178 = vld [vmem:[%s353 + $0x20] sm:$0xff]
        %v2179 = vld [vmem:[%s353 + $0x28] sm:$0xff]
        %v2180 = vld [vmem:[%s353 + $0x30] sm:$0xff]
        %v2181 = vld [vmem:[%s353 + $0x38] sm:$0xff]
        %v2182 = vld [vmem:[%s353 + $0x40] sm:$0xff]
        %v2183 = vld [vmem:[%s353 + $0x48] sm:$0xff]
        %v2184 = vld [vmem:[%s353 + $0x50] sm:$0xff]
        %v2185 = vld [vmem:[%s353 + $0x58] sm:$0xff]
        %v2186 = vld [vmem:[%s353 + $0x60] sm:$0xff]
        %v2187 = vld [vmem:[%s353 + $0x68] sm:$0xff]
        %v2188 = vld [vmem:[%s353 + $0x70] sm:$0xff]
        %v2189 = vld [vmem:[%s353 + $0x78] sm:$0xff]
        %v2190 = vld [vmem:[%s353 + $0x80] sm:$0xff]
        %v2191 = vld [vmem:[%s353 + $0x88] sm:$0xff]
        %v2192 = vld [vmem:[%s353 + $0x90] sm:$0xff]
        %v2193 = vld [vmem:[%s353 + $0x98] sm:$0xff]
        %v2194 = vld [vmem:[%s353 + $0xa0] sm:$0xff]
        %v2195 = vld [vmem:[%s353 + $0xa8] sm:$0xff]
        %v2196 = vld [vmem:[%s353 + $0xb0] sm:$0xff]
        %v2197 = vld [vmem:[%s353 + $0xb8] sm:$0xff]
        %v2198 = vld [vmem:[%s353 + $0xc0] sm:$0xff]
        %v2199 = vld [vmem:[%s353 + $0xc8] sm:$0xff]
        %v2200 = vld [vmem:[%s353 + $0xd0] sm:$0xff]
        %v2201 = vld [vmem:[%s353 + $0xd8] sm:$0xff]
        %v2202 = vld [vmem:[%s353 + $0xe0] sm:$0xff]
        %v2203 = vld [vmem:[%s353 + $0xe8] sm:$0xff]
        %v2204 = vld [vmem:[%s353 + $0xf0] sm:$0xff]
        %v2205 = vld [vmem:[%s353 + $0xf8] sm:$0xff]
        %v2206 = vmul.f32 %v1612, %v2142
        %v2207 = vmul.f32 %v1614, %v2143
        %v2208 = vmul.f32 %v1616, %v2144
        %v2209 = vmul.f32 %v1618, %v2145
        %v2210 = vmul.f32 %v1622, %v2146
        %v2211 = vmul.f32 %v1624, %v2147
        %v2212 = vmul.f32 %v1626, %v2148
        %v2213 = vmul.f32 %v1628, %v2149
        %v2214 = vmul.f32 %v1632, %v2150
        %v2215 = vmul.f32 %v1634, %v2151
        %v2216 = vmul.f32 %v1636, %v2152
        %v2217 = vmul.f32 %v1638, %v2153
        %v2218 = vmul.f32 %v1642, %v2154
        %v2219 = vmul.f32 %v1644, %v2155
        %v2220 = vmul.f32 %v1646, %v2156
        %v2221 = vmul.f32 %v1648, %v2157
        %v2222 = vmul.f32 %v1652, %v2158
        %v2223 = vmul.f32 %v1654, %v2159
        %v2224 = vmul.f32 %v1656, %v2160
        %v2225 = vmul.f32 %v1658, %v2161
        %v2226 = vmul.f32 %v1662, %v2162
        %v2227 = vmul.f32 %v1664, %v2163
        %v2228 = vmul.f32 %v1666, %v2164
        %v2229 = vmul.f32 %v1668, %v2165
        %v2230 = vmul.f32 %v1672, %v2166
        %v2231 = vmul.f32 %v1674, %v2167
        %v2232 = vmul.f32 %v1676, %v2168
        %v2233 = vmul.f32 %v1678, %v2169
        %v2234 = vmul.f32 %v1682, %v2170
        %v2235 = vmul.f32 %v1684, %v2171
        %v2236 = vmul.f32 %v1686, %v2172
        %v2237 = vmul.f32 %v1688, %v2173
        %v2238 = vmul.f32 %v1725, %v2174
        %v2239 = vmul.f32 %v1727, %v2175
        %v2240 = vmul.f32 %v1729, %v2176
        %v2241 = vmul.f32 %v1731, %v2177
        %v2242 = vmul.f32 %v1735, %v2178
        %v2243 = vmul.f32 %v1737, %v2179
        %v2244 = vmul.f32 %v1739, %v2180
        %v2245 = vmul.f32 %v1741, %v2181
        %v2246 = vmul.f32 %v1745, %v2182
        %v2247 = vmul.f32 %v1747, %v2183
        %v2248 = vmul.f32 %v1749, %v2184
        %v2249 = vmul.f32 %v1751, %v2185
        %v2250 = vmul.f32 %v1755, %v2186
        %v2251 = vmul.f32 %v1757, %v2187
        %v2252 = vmul.f32 %v1759, %v2188
        %v2253 = vmul.f32 %v1761, %v2189
        %v2254 = vmul.f32 %v1765, %v2190
        %v2255 = vmul.f32 %v1767, %v2191
        %v2256 = vmul.f32 %v1769, %v2192
        %v2257 = vmul.f32 %v1771, %v2193
        %v2258 = vmul.f32 %v1775, %v2194
        %v2259 = vmul.f32 %v1777, %v2195
        %v2260 = vmul.f32 %v1779, %v2196
        %v2261 = vmul.f32 %v1781, %v2197
        %v2262 = vmul.f32 %v1785, %v2198
        %v2263 = vmul.f32 %v1787, %v2199
        %v2264 = vmul.f32 %v1789, %v2200
        %v2265 = vmul.f32 %v1791, %v2201
        %v2266 = vmul.f32 %v1795, %v2202
        %v2267 = vmul.f32 %v1797, %v2203
        %v2268 = vmul.f32 %v1799, %v2204
        %v2269 = vmul.f32 %v1801, %v2205
        %v2270 = vadd.f32 %v2206, %v2238
        %v2271 = vadd.f32 %v2207, %v2239
        %v2272 = vadd.f32 %v2208, %v2240
        %v2273 = vadd.f32 %v2209, %v2241
        %v2274 = vadd.f32 %v2210, %v2242
        %v2275 = vadd.f32 %v2211, %v2243
        %v2276 = vadd.f32 %v2212, %v2244
        %v2277 = vadd.f32 %v2213, %v2245
        %v2278 = vadd.f32 %v2214, %v2246
        %v2279 = vadd.f32 %v2215, %v2247
        %v2280 = vadd.f32 %v2216, %v2248
        %v2281 = vadd.f32 %v2217, %v2249
        %v2282 = vadd.f32 %v2218, %v2250
        %v2283 = vadd.f32 %v2219, %v2251
        %v2284 = vadd.f32 %v2220, %v2252
        %v2285 = vadd.f32 %v2221, %v2253
        %v2286 = vadd.f32 %v2222, %v2254
        %v2287 = vadd.f32 %v2223, %v2255
        %v2288 = vadd.f32 %v2224, %v2256
        %v2289 = vadd.f32 %v2225, %v2257
        %v2290 = vadd.f32 %v2226, %v2258
        %v2291 = vadd.f32 %v2227, %v2259
        %v2292 = vadd.f32 %v2228, %v2260
        %v2293 = vadd.f32 %v2229, %v2261
        %v2294 = vadd.f32 %v2230, %v2262
        %v2295 = vadd.f32 %v2231, %v2263
        %v2296 = vadd.f32 %v2232, %v2264
        %v2297 = vadd.f32 %v2233, %v2265
        %v2298 = vadd.f32 %v2234, %v2266
        %v2299 = vadd.f32 %v2235, %v2267
        %v2300 = vadd.f32 %v2236, %v2268
        %v2301 = vadd.f32 %v2237, %v2269
        %v2302 = vpack.c.bf16 %v2272, %v2270
        %v2303 = vpack.c.bf16 %v2273, %v2271
        %v2304 = vpack.c.bf16 %v2276, %v2274
        %v2305 = vpack.c.bf16 %v2277, %v2275
        %v2306 = vpack.c.bf16 %v2280, %v2278
        %v2307 = vpack.c.bf16 %v2281, %v2279
        %v2308 = vpack.c.bf16 %v2284, %v2282
        %v2309 = vpack.c.bf16 %v2285, %v2283
        %v2310 = vpack.c.bf16 %v2288, %v2286
        %v2311 = vpack.c.bf16 %v2289, %v2287
        %v2312 = vpack.c.bf16 %v2292, %v2290
        %v2313 = vpack.c.bf16 %v2293, %v2291
        %v2314 = vpack.c.bf16 %v2296, %v2294
        %v2315 = vpack.c.bf16 %v2297, %v2295
        %v2316 = vpack.c.bf16 %v2300, %v2298
        %v2317 = vpack.c.bf16 %v2301, %v2299
        %v2334 = vunpack.c.l.b16 %v2302
        %v2335 = vunpack.c.l.b16 %v2303
        %v2336 = vunpack.c.h.b16 %v2302
        %v2337 = vunpack.c.h.b16 %v2303
        %v2338 = vunpack.c.l.b16 %v2304
        %v2339 = vunpack.c.l.b16 %v2305
        %v2340 = vunpack.c.h.b16 %v2304
        %v2341 = vunpack.c.h.b16 %v2305
        %v2342 = vunpack.c.l.b16 %v2306
        %v2343 = vunpack.c.l.b16 %v2307
        %v2344 = vunpack.c.h.b16 %v2306
        %v2345 = vunpack.c.h.b16 %v2307
        %v2346 = vunpack.c.l.b16 %v2308
        %v2347 = vunpack.c.l.b16 %v2309
        %v2348 = vunpack.c.h.b16 %v2308
        %v2349 = vunpack.c.h.b16 %v2309
        %v2350 = vunpack.c.l.b16 %v2310
        %v2351 = vunpack.c.l.b16 %v2311
        %v2352 = vunpack.c.h.b16 %v2310
        %v2353 = vunpack.c.h.b16 %v2311
        %v2354 = vunpack.c.l.b16 %v2312
        %v2355 = vunpack.c.l.b16 %v2313
        %v2356 = vunpack.c.h.b16 %v2312
        %v2357 = vunpack.c.h.b16 %v2313
        %v2358 = vunpack.c.l.b16 %v2314
        %v2359 = vunpack.c.l.b16 %v2315
        %v2360 = vunpack.c.h.b16 %v2314
        %v2361 = vunpack.c.h.b16 %v2315
        %v2362 = vunpack.c.l.b16 %v2316
        %v2363 = vunpack.c.l.b16 %v2317
        %v2364 = vunpack.c.h.b16 %v2316
        %v2365 = vunpack.c.h.b16 %v2317
        %v2366 = vpack.c.b16 %v2335, %v2334
        %v2367 = vpack.c.b16 %v2337, %v2336
        %v2368 = vpack.c.b16 %v2339, %v2338
        %v2369 = vpack.c.b16 %v2341, %v2340
        %v2370 = vpack.c.b16 %v2343, %v2342
        %v2371 = vpack.c.b16 %v2345, %v2344
        %v2372 = vpack.c.b16 %v2347, %v2346
        %v2373 = vpack.c.b16 %v2349, %v2348
        %v2374 = vpack.c.b16 %v2351, %v2350
        %v2375 = vpack.c.b16 %v2353, %v2352
        %v2376 = vpack.c.b16 %v2355, %v2354
        %v2377 = vpack.c.b16 %v2357, %v2356
        %v2378 = vpack.c.b16 %v2359, %v2358
        %v2379 = vpack.c.b16 %v2361, %v2360
        %v2380 = vpack.c.b16 %v2363, %v2362
        %v2381 = vpack.c.b16 %v2365, %v2364
        %2398 = vst [vmem:[%s387] sm:$0xff] %v2366
        %2399 = vst [vmem:[%s387 + $0x8] sm:$0xff] %v2367
        %2400 = vst [vmem:[%s387 + $0x10] sm:$0xff] %v2368
        %2401 = vst [vmem:[%s387 + $0x18] sm:$0xff] %v2369
        %2402 = vst [vmem:[%s387 + $0x20] sm:$0xff] %v2370
        %2403 = vst [vmem:[%s387 + $0x28] sm:$0xff] %v2371
        %2404 = vst [vmem:[%s387 + $0x30] sm:$0xff] %v2372
        %2405 = vst [vmem:[%s387 + $0x38] sm:$0xff] %v2373
        %2406 = vst [vmem:[%s387 + $0x40] sm:$0xff] %v2374
        %2407 = vst [vmem:[%s387 + $0x48] sm:$0xff] %v2375
        %2408 = vst [vmem:[%s387 + $0x50] sm:$0xff] %v2376
        %2409 = vst [vmem:[%s387 + $0x58] sm:$0xff] %v2377
        %2410 = vst [vmem:[%s387 + $0x60] sm:$0xff] %v2378
        %2411 = vst [vmem:[%s387 + $0x68] sm:$0xff] %v2379
        %2412 = vst [vmem:[%s387 + $0x70] sm:$0xff] %v2380
        %2413 = vst [vmem:[%s387 + $0x78] sm:$0xff] %v2381
        %v2414 = vmul.f32 %v1838, %v2142
        %v2415 = vmul.f32 %v1840, %v2143
        %v2416 = vmul.f32 %v1842, %v2144
        %v2417 = vmul.f32 %v1844, %v2145
        %v2418 = vmul.f32 %v1848, %v2146
        %v2419 = vmul.f32 %v1850, %v2147
        %v2420 = vmul.f32 %v1852, %v2148
        %v2421 = vmul.f32 %v1854, %v2149
        %v2422 = vmul.f32 %v1858, %v2150
        %v2423 = vmul.f32 %v1860, %v2151
        %v2424 = vmul.f32 %v1862, %v2152
        %v2425 = vmul.f32 %v1864, %v2153
        %v2426 = vmul.f32 %v1868, %v2154
        %v2427 = vmul.f32 %v1870, %v2155
        %v2428 = vmul.f32 %v1872, %v2156
        %v2429 = vmul.f32 %v1874, %v2157
        %v2430 = vmul.f32 %v1878, %v2158
        %v2431 = vmul.f32 %v1880, %v2159
        %v2432 = vmul.f32 %v1882, %v2160
        %v2433 = vmul.f32 %v1884, %v2161
        %v2434 = vmul.f32 %v1888, %v2162
        %v2435 = vmul.f32 %v1890, %v2163
        %v2436 = vmul.f32 %v1892, %v2164
        %v2437 = vmul.f32 %v1894, %v2165
        %v2438 = vmul.f32 %v1898, %v2166
        %v2439 = vmul.f32 %v1900, %v2167
        %v2440 = vmul.f32 %v1902, %v2168
        %v2441 = vmul.f32 %v1904, %v2169
        %v2442 = vmul.f32 %v1908, %v2170
        %v2443 = vmul.f32 %v1910, %v2171
        %v2444 = vmul.f32 %v1912, %v2172
        %v2445 = vmul.f32 %v1914, %v2173
        %v2446 = vmul.f32 %v1951, %v2174
        %v2447 = vmul.f32 %v1953, %v2175
        %v2448 = vmul.f32 %v1955, %v2176
        %v2449 = vmul.f32 %v1957, %v2177
        %v2450 = vmul.f32 %v1961, %v2178
        %v2451 = vmul.f32 %v1963, %v2179
        %v2452 = vmul.f32 %v1965, %v2180
        %v2453 = vmul.f32 %v1967, %v2181
        %v2454 = vmul.f32 %v1971, %v2182
        %v2455 = vmul.f32 %v1973, %v2183
        %v2456 = vmul.f32 %v1975, %v2184
        %v2457 = vmul.f32 %v1977, %v2185
        %v2458 = vmul.f32 %v1981, %v2186
        %v2459 = vmul.f32 %v1983, %v2187
        %v2460 = vmul.f32 %v1985, %v2188
        %v2461 = vmul.f32 %v1987, %v2189
        %v2462 = vmul.f32 %v1991, %v2190
        %v2463 = vmul.f32 %v1993, %v2191
        %v2464 = vmul.f32 %v1995, %v2192
        %v2465 = vmul.f32 %v1997, %v2193
        %v2466 = vmul.f32 %v2001, %v2194
        %v2467 = vmul.f32 %v2003, %v2195
        %v2468 = vmul.f32 %v2005, %v2196
        %v2469 = vmul.f32 %v2007, %v2197
        %v2470 = vmul.f32 %v2011, %v2198
        %v2471 = vmul.f32 %v2013, %v2199
        %v2472 = vmul.f32 %v2015, %v2200
        %v2473 = vmul.f32 %v2017, %v2201
        %v2474 = vmul.f32 %v2021, %v2202
        %v2475 = vmul.f32 %v2023, %v2203
        %v2476 = vmul.f32 %v2025, %v2204
        %v2477 = vmul.f32 %v2027, %v2205
        %v2478 = vadd.f32 %v2414, %v2446
        %v2479 = vadd.f32 %v2415, %v2447
        %v2480 = vadd.f32 %v2416, %v2448
        %v2481 = vadd.f32 %v2417, %v2449
        %v2482 = vadd.f32 %v2418, %v2450
        %v2483 = vadd.f32 %v2419, %v2451
        %v2484 = vadd.f32 %v2420, %v2452
        %v2485 = vadd.f32 %v2421, %v2453
        %v2486 = vadd.f32 %v2422, %v2454
        %v2487 = vadd.f32 %v2423, %v2455
        %v2488 = vadd.f32 %v2424, %v2456
        %v2489 = vadd.f32 %v2425, %v2457
        %v2490 = vadd.f32 %v2426, %v2458
        %v2491 = vadd.f32 %v2427, %v2459
        %v2492 = vadd.f32 %v2428, %v2460
        %v2493 = vadd.f32 %v2429, %v2461
        %v2494 = vadd.f32 %v2430, %v2462
        %v2495 = vadd.f32 %v2431, %v2463
        %v2496 = vadd.f32 %v2432, %v2464
        %v2497 = vadd.f32 %v2433, %v2465
        %v2498 = vadd.f32 %v2434, %v2466
        %v2499 = vadd.f32 %v2435, %v2467
        %v2500 = vadd.f32 %v2436, %v2468
        %v2501 = vadd.f32 %v2437, %v2469
        %v2502 = vadd.f32 %v2438, %v2470
        %v2503 = vadd.f32 %v2439, %v2471
        %v2504 = vadd.f32 %v2440, %v2472
        %v2505 = vadd.f32 %v2441, %v2473
        %v2506 = vadd.f32 %v2442, %v2474
        %v2507 = vadd.f32 %v2443, %v2475
        %v2508 = vadd.f32 %v2444, %v2476
        %v2509 = vadd.f32 %v2445, %v2477
        %v2510 = vpack.c.bf16 %v2480, %v2478
        %v2511 = vpack.c.bf16 %v2481, %v2479
        %v2512 = vpack.c.bf16 %v2484, %v2482
        %v2513 = vpack.c.bf16 %v2485, %v2483
        %v2514 = vpack.c.bf16 %v2488, %v2486
        %v2515 = vpack.c.bf16 %v2489, %v2487
        %v2516 = vpack.c.bf16 %v2492, %v2490
        %v2517 = vpack.c.bf16 %v2493, %v2491
        %v2518 = vpack.c.bf16 %v2496, %v2494
        %v2519 = vpack.c.bf16 %v2497, %v2495
        %v2520 = vpack.c.bf16 %v2500, %v2498
        %v2521 = vpack.c.bf16 %v2501, %v2499
        %v2522 = vpack.c.bf16 %v2504, %v2502
        %v2523 = vpack.c.bf16 %v2505, %v2503
        %v2524 = vpack.c.bf16 %v2508, %v2506
        %v2525 = vpack.c.bf16 %v2509, %v2507
        %v2542 = vunpack.c.l.b16 %v2510
        %v2543 = vunpack.c.l.b16 %v2511
        %v2544 = vunpack.c.h.b16 %v2510
        %v2545 = vunpack.c.h.b16 %v2511
        %v2546 = vunpack.c.l.b16 %v2512
        %v2547 = vunpack.c.l.b16 %v2513
        %v2548 = vunpack.c.h.b16 %v2512
        %v2549 = vunpack.c.h.b16 %v2513
        %v2550 = vunpack.c.l.b16 %v2514
        %v2551 = vunpack.c.l.b16 %v2515
        %v2552 = vunpack.c.h.b16 %v2514
        %v2553 = vunpack.c.h.b16 %v2515
        %v2554 = vunpack.c.l.b16 %v2516
        %v2555 = vunpack.c.l.b16 %v2517
        %v2556 = vunpack.c.h.b16 %v2516
        %v2557 = vunpack.c.h.b16 %v2517
        %v2558 = vunpack.c.l.b16 %v2518
        %v2559 = vunpack.c.l.b16 %v2519
        %v2560 = vunpack.c.h.b16 %v2518
        %v2561 = vunpack.c.h.b16 %v2519
        %v2562 = vunpack.c.l.b16 %v2520
        %v2563 = vunpack.c.l.b16 %v2521
        %v2564 = vunpack.c.h.b16 %v2520
        %v2565 = vunpack.c.h.b16 %v2521
        %v2566 = vunpack.c.l.b16 %v2522
        %v2567 = vunpack.c.l.b16 %v2523
        %v2568 = vunpack.c.h.b16 %v2522
        %v2569 = vunpack.c.h.b16 %v2523
        %v2570 = vunpack.c.l.b16 %v2524
        %v2571 = vunpack.c.l.b16 %v2525
        %v2572 = vunpack.c.h.b16 %v2524
        %v2573 = vunpack.c.h.b16 %v2525
        %v2574 = vpack.c.b16 %v2543, %v2542
        %v2575 = vpack.c.b16 %v2545, %v2544
        %v2576 = vpack.c.b16 %v2547, %v2546
        %v2577 = vpack.c.b16 %v2549, %v2548
        %v2578 = vpack.c.b16 %v2551, %v2550
        %v2579 = vpack.c.b16 %v2553, %v2552
        %v2580 = vpack.c.b16 %v2555, %v2554
        %v2581 = vpack.c.b16 %v2557, %v2556
        %v2582 = vpack.c.b16 %v2559, %v2558
        %v2583 = vpack.c.b16 %v2561, %v2560
        %v2584 = vpack.c.b16 %v2563, %v2562
        %v2585 = vpack.c.b16 %v2565, %v2564
        %v2586 = vpack.c.b16 %v2567, %v2566
        %v2587 = vpack.c.b16 %v2569, %v2568
        %v2588 = vpack.c.b16 %v2571, %v2570
        %v2589 = vpack.c.b16 %v2573, %v2572
        %2606 = vst [vmem:[%s394] sm:$0xff] %v2574
        %2607 = vst [vmem:[%s394 + $0x8] sm:$0xff] %v2575
        %2608 = vst [vmem:[%s394 + $0x10] sm:$0xff] %v2576
        %2609 = vst [vmem:[%s394 + $0x18] sm:$0xff] %v2577
        %2610 = vst [vmem:[%s394 + $0x20] sm:$0xff] %v2578
        %2611 = vst [vmem:[%s394 + $0x28] sm:$0xff] %v2579
        %2612 = vst [vmem:[%s394 + $0x30] sm:$0xff] %v2580
        %2613 = vst [vmem:[%s394 + $0x38] sm:$0xff] %v2581
        %2614 = vst [vmem:[%s394 + $0x40] sm:$0xff] %v2582
        %2615 = vst [vmem:[%s394 + $0x48] sm:$0xff] %v2583
        %2616 = vst [vmem:[%s394 + $0x50] sm:$0xff] %v2584
        %2617 = vst [vmem:[%s394 + $0x58] sm:$0xff] %v2585
        %2618 = vst [vmem:[%s394 + $0x60] sm:$0xff] %v2586
        %2619 = vst [vmem:[%s394 + $0x68] sm:$0xff] %v2587
        %2620 = vst [vmem:[%s394 + $0x70] sm:$0xff] %v2588
        %2621 = vst [vmem:[%s394 + $0x78] sm:$0xff] %v2589
        %v2622 = vpack.c.bf16 %v2068, %v2064
        %v2623 = vpack.c.bf16 %v2070, %v2066
        %v2624 = vpack.c.bf16 %v2078, %v2074
        %v2625 = vpack.c.bf16 %v2080, %v2076
        %v2626 = vpack.c.bf16 %v2088, %v2084
        %v2627 = vpack.c.bf16 %v2090, %v2086
        %v2628 = vpack.c.bf16 %v2098, %v2094
        %v2629 = vpack.c.bf16 %v2100, %v2096
        %v2630 = vpack.c.bf16 %v2108, %v2104
        %v2631 = vpack.c.bf16 %v2110, %v2106
        %v2632 = vpack.c.bf16 %v2118, %v2114
        %v2633 = vpack.c.bf16 %v2120, %v2116
        %v2634 = vpack.c.bf16 %v2128, %v2124
        %v2635 = vpack.c.bf16 %v2130, %v2126
        %v2636 = vpack.c.bf16 %v2138, %v2134
        %v2637 = vpack.c.bf16 %v2140, %v2136
        %v2654 = vunpack.c.l.b16 %v2622
        %v2655 = vunpack.c.l.b16 %v2623
        %v2656 = vunpack.c.h.b16 %v2622
        %v2657 = vunpack.c.h.b16 %v2623
        %v2658 = vunpack.c.l.b16 %v2624
        %v2659 = vunpack.c.l.b16 %v2625
        %v2660 = vunpack.c.h.b16 %v2624
        %v2661 = vunpack.c.h.b16 %v2625
        %v2662 = vunpack.c.l.b16 %v2626
        %v2663 = vunpack.c.l.b16 %v2627
        %v2664 = vunpack.c.h.b16 %v2626
        %v2665 = vunpack.c.h.b16 %v2627
        %v2666 = vunpack.c.l.b16 %v2628
        %v2667 = vunpack.c.l.b16 %v2629
        %v2668 = vunpack.c.h.b16 %v2628
        %v2669 = vunpack.c.h.b16 %v2629
        %v2670 = vunpack.c.l.b16 %v2630
        %v2671 = vunpack.c.l.b16 %v2631
        %v2672 = vunpack.c.h.b16 %v2630
        %v2673 = vunpack.c.h.b16 %v2631
        %v2674 = vunpack.c.l.b16 %v2632
        %v2675 = vunpack.c.l.b16 %v2633
        %v2676 = vunpack.c.h.b16 %v2632
        %v2677 = vunpack.c.h.b16 %v2633
        %v2678 = vunpack.c.l.b16 %v2634
        %v2679 = vunpack.c.l.b16 %v2635
        %v2680 = vunpack.c.h.b16 %v2634
        %v2681 = vunpack.c.h.b16 %v2635
        %v2682 = vunpack.c.l.b16 %v2636
        %v2683 = vunpack.c.l.b16 %v2637
        %v2684 = vunpack.c.h.b16 %v2636
        %v2685 = vunpack.c.h.b16 %v2637
        %v2686 = vpack.c.b16 %v2655, %v2654
        %v2687 = vpack.c.b16 %v2657, %v2656
        %v2688 = vpack.c.b16 %v2659, %v2658
        %v2689 = vpack.c.b16 %v2661, %v2660
        %v2690 = vpack.c.b16 %v2663, %v2662
        %v2691 = vpack.c.b16 %v2665, %v2664
        %v2692 = vpack.c.b16 %v2667, %v2666
        %v2693 = vpack.c.b16 %v2669, %v2668
        %v2694 = vpack.c.b16 %v2671, %v2670
        %v2695 = vpack.c.b16 %v2673, %v2672
        %v2696 = vpack.c.b16 %v2675, %v2674
        %v2697 = vpack.c.b16 %v2677, %v2676
        %v2698 = vpack.c.b16 %v2679, %v2678
        %v2699 = vpack.c.b16 %v2681, %v2680
        %v2700 = vpack.c.b16 %v2683, %v2682
        %v2701 = vpack.c.b16 %v2685, %v2684
        %2718 = vst [vmem:[%s401] sm:$0xff] %v2686
        %2719 = vst [vmem:[%s401 + $0x8] sm:$0xff] %v2687
        %2720 = vst [vmem:[%s401 + $0x10] sm:$0xff] %v2688
        %2721 = vst [vmem:[%s401 + $0x18] sm:$0xff] %v2689
        %2722 = vst [vmem:[%s401 + $0x20] sm:$0xff] %v2690
        %2723 = vst [vmem:[%s401 + $0x28] sm:$0xff] %v2691
        %2724 = vst [vmem:[%s401 + $0x30] sm:$0xff] %v2692
        %2725 = vst [vmem:[%s401 + $0x38] sm:$0xff] %v2693
        %2726 = vst [vmem:[%s401 + $0x40] sm:$0xff] %v2694
        %2727 = vst [vmem:[%s401 + $0x48] sm:$0xff] %v2695
        %2728 = vst [vmem:[%s401 + $0x50] sm:$0xff] %v2696
        %2729 = vst [vmem:[%s401 + $0x58] sm:$0xff] %v2697
        %2730 = vst [vmem:[%s401 + $0x60] sm:$0xff] %v2698
        %2731 = vst [vmem:[%s401 + $0x68] sm:$0xff] %v2699
        %2732 = vst [vmem:[%s401 + $0x70] sm:$0xff] %v2700
        %2733 = vst [vmem:[%s401 + $0x78] sm:$0xff] %v2701
        %s2734 = sand.u32 %s151, 1
        %s2735 = scalar_lea.sflag [#allocation4], %s2734
        %s2736 = sand.u32 %s151, 1
        %s2737 = smul.addr %s2736, 128
        %s2738 = scalar_lea.vmem [#allocation9], %s2737
        %s2739 = sand.u32 %s28, 1
        %s2740 = scalar_lea.sflag [#allocation11], %s2739
        %s2741 = sand.u32 %s179, 1
        %s2742 = smul.addr %s2741, 128
        %s2743 = scalar_lea.vmem [#allocation10], %s2742
        %s2744 = sand.u32 %s28, 1
        %s2745 = scalar_lea.sflag [#allocation11], %s2744
        %s2746 = sand.u32 %s207, 1
        %s2747 = smul.addr %s2746, 128
        %s2748 = scalar_lea.vmem [#allocation12], %s2747
        // Predicated region
        $region53: #{tpu_custom_call.1} parent=35 // pred_check
          %p2749 = pneg %p161
        $region54: #{tpu_custom_call.1} parent=35 // pred_check_branch
          %2751 = sbr.rel (%p2749) target = $region56
        $region55: #{tpu_custom_call.1} parent=35 // pred_region
          %s2752 = smul.u32 16, %s33
          %s2754 = ssub.s32 2048, 2048
          %2755 = vsyncadd %s2735, %s2754
          %s2756 = smul.addr %s2752, 2
          %s2757 = smul.addr %s32, 64
          %s2758 = sadd.s32 %s2756, %s2757
          %s2759 = smul.addr %s2758, 64
          %s2760 = scalar_lea.hbm %s4, %s2759
          %s2761 = sshll.u32 %s2738, 4
          %s2762 = int_to_ptr.vmem [resolvable:$true] %s2761
          %2767 = dma.vmem_to_hbm [thread:$0]  %s2762, 2048, %s2760, %s2735, 128, 128, 8
        $region56: #{tpu_custom_call.1} parent=35 // pred_fallthru
          _
        // Predicated region
        $region57: #{tpu_custom_call.1} parent=35 // pred_check
          %p2768 = pneg %p189
        $region58: #{tpu_custom_call.1} parent=35 // pred_check_branch
          %2770 = sbr.rel (%p2768) target = $region60
        $region59: #{tpu_custom_call.1} parent=35 // pred_region
          %s2771 = smul.u32 16, %s33
          %s2773 = ssub.s32 2048, 2048
          %2774 = vsyncadd %s2740, %s2773
          %s2775 = smul.addr %s2771, 2
          %s2776 = smul.addr %s32, 64
          %s2777 = sadd.s32 %s2775, %s2776
          %s2778 = smul.addr %s2777, 64
          %s2779 = scalar_lea.hbm %s5, %s2778
          %s2780 = sshll.u32 %s2743, 4
          %s2781 = int_to_ptr.vmem [resolvable:$true] %s2780
          %2786 = dma.vmem_to_hbm [thread:$0]  %s2781, 2048, %s2779, %s2740, 128, 128, 8
        $region60: #{tpu_custom_call.1} parent=35 // pred_fallthru
          _
        // Predicated region
        $region61: #{tpu_custom_call.1} parent=35 // pred_check
          %p2787 = pneg %p217
        $region62: #{tpu_custom_call.1} parent=35 // pred_check_branch
          %2789 = sbr.rel (%p2787) target = $region64
        $region63: #{tpu_custom_call.1} parent=35 // pred_region
          %s2790 = smul.u32 16, %s33
          %s2792 = ssub.s32 2048, 2048
          %2793 = vsyncadd %s2745, %s2792
          %s2794 = smul.addr %s2790, 2
          %s2795 = smul.addr %s32, 64
          %s2796 = sadd.s32 %s2794, %s2795
          %s2797 = smul.addr %s2796, 64
          %s2798 = scalar_lea.hbm %s6, %s2797
          %s2799 = sshll.u32 %s2748, 4
          %s2800 = int_to_ptr.vmem [resolvable:$true] %s2799
          %2805 = dma.vmem_to_hbm [thread:$0]  %s2800, 2048, %s2798, %s2745, 128, 128, 8
        $region64: #{tpu_custom_call.1} parent=35 // pred_fallthru
          _
      $region36: #{tpu_custom_call.1} parent=5 // pred_fallthru
        _
      %p2806 = scmp.le.s32.totalorder 2, %s23
      // Predicated region
      $region65: #{tpu_custom_call.1} parent=5 // pred_check
        %p2807 = pneg %p2806
      $region66: #{tpu_custom_call.1} parent=5 // pred_check_branch
        %2809 = sbr.rel (%p2807) target = $region68
      $region67: #{tpu_custom_call.1} parent=5 // pred_region
        %s2810 = ssub.s32 %s23, 2
        // Predicated region
        $region69: #{tpu_custom_call.1} parent=67 // pred_check
          %p2811 = pneg %p167
        $region70: #{tpu_custom_call.1} parent=67 // pred_check_branch
          %2813 = sbr.rel (%p2811) target = $region72
        $region71: #{tpu_custom_call.1} parent=67 // pred_region
          %s2814 = sand.u32 %s152, 1
          %s2815 = scalar_lea.sflag [#allocation4], %s2814
          %s2816 = sand.u32 %s152, 1
          %s2817 = smul.addr %s2816, 128
          %s2818 = scalar_lea.vmem [#allocation9], %s2817
          %2819 = dma.done %s2815, 2048
        $region72: #{tpu_custom_call.1} parent=67 // pred_fallthru
          _
        // Predicated region
        $region73: #{tpu_custom_call.1} parent=67 // pred_check
          %p2820 = pneg %p195
        $region74: #{tpu_custom_call.1} parent=67 // pred_check_branch
          %2822 = sbr.rel (%p2820) target = $region76
        $region75: #{tpu_custom_call.1} parent=67 // pred_region
          %s2823 = sand.u32 %s29, 1
          %s2824 = scalar_lea.sflag [#allocation11], %s2823
          %s2825 = sand.u32 %s180, 1
          %s2826 = smul.addr %s2825, 128
          %s2827 = scalar_lea.vmem [#allocation10], %s2826
          %2828 = dma.done %s2824, 2048
        $region76: #{tpu_custom_call.1} parent=67 // pred_fallthru
          _
        // Predicated region
        $region77: #{tpu_custom_call.1} parent=67 // pred_check
          %p2829 = pneg %p223
        $region78: #{tpu_custom_call.1} parent=67 // pred_check_branch
          %2831 = sbr.rel (%p2829) target = $region80
        $region79: #{tpu_custom_call.1} parent=67 // pred_region
          %s2832 = sand.u32 %s29, 1
          %s2833 = scalar_lea.sflag [#allocation11], %s2832
          %s2834 = sand.u32 %s208, 1
          %s2835 = smul.addr %s2834, 128
          %s2836 = scalar_lea.vmem [#allocation12], %s2835
          %2837 = dma.done %s2833, 2048
        $region80: #{tpu_custom_call.1} parent=67 // pred_fallthru
          _
      $region68: #{tpu_custom_call.1} parent=5 // pred_fallthru
        _
    $region6: #{tpu_custom_call.1} parent=1 // loop_footer
      %s27 = sadd.s32 1, %s23
    $region7: #{tpu_custom_call.1} parent=1 // loop_footer_branch
      %22 = sbr.rel target = $region3
    $region8: #{tpu_custom_call.1} parent=1 // loop_exit
      _
    %2838 = vsyncpa [#allocation3], 1
    %s2839 = scalar_lea.sflag [#allocation3], 1
    %2840 = vsyncpa %s2839, 1
    %2841 = vsyncpa [#allocation6], 1
    %2842 = vsyncpa [#allocation4], 1
    %s2843 = scalar_lea.sflag [#allocation4], 1
    %2844 = vsyncpa %s2843, 1
    %2845 = vsyncpa [#allocation11], 1
    %s2846 = scalar_lea.sflag [#allocation11], 1
    %2847 = vsyncpa %s2846, 1

</llo_original>
